<compile_context>
chip_gen: v6e
topology: v6e:2x2x1
jax: 0.10.0
libtpu: 0.0.40
codegen_flags: <defaults>
</compile_context>

<pallas_src>
import functools

import numpy as np
import jax
import jax.numpy as jnp
from jax.experimental import pallas as pl
from jax.experimental.pallas import tpu as pltpu

# ---------------- module hyperparameters (defaults from __init__) -------------
FILTER_LENGTH = 1024          # n_fft
HOP_LENGTH = 256
WIN_LENGTH = 1024
N_MELS = 80
MEL_FMIN = 0.0
MEL_FMAX = 8000.0
SAMPLING_RATE = 22050

assert WIN_LENGTH == FILTER_LENGTH
assert FILTER_LENGTH % HOP_LENGTH == 0

N_FREQS = FILTER_LENGTH // 2 + 1            # 513 one-sided bins
HALF_N = FILTER_LENGTH // 2                 # 512 (folded DFT length)
N_MELS_PAD = pl.cdiv(N_MELS, 128) * 128     # 128 (lane-dense output)
MAX_ROW_TILE = 512                          # frames per grid step (MXU M dim)
FRAMES_PER_HOP_GROUP = FILTER_LENGTH // HOP_LENGTH   # 4


# ---------------- filterbank / window construction (plain numpy glue) ---------
def _hz_to_mel_htk(f):
    return 2595.0 * np.log10(1.0 + np.asarray(f, np.float64) / 700.0)


def _mel_to_hz_htk(m):
    return 700.0 * (10.0 ** (np.asarray(m, np.float64) / 2595.0) - 1.0)


def _melscale_fbanks(n_freqs, f_min, f_max, n_mels, sample_rate):
    # torchaudio.functional.melscale_fbanks(mel_scale='htk', norm='slaney')
    all_freqs = np.linspace(0.0, sample_rate / 2.0, n_freqs)
    m_min, m_max = _hz_to_mel_htk(f_min), _hz_to_mel_htk(f_max)
    m_pts = np.linspace(m_min, m_max, n_mels + 2)
    f_pts = _mel_to_hz_htk(m_pts)
    f_diff = f_pts[1:] - f_pts[:-1]
    slopes = f_pts[None, :] - all_freqs[:, None]
    down = -slopes[:, :-2] / f_diff[:-1]
    up = slopes[:, 2:] / f_diff[1:]
    fb = np.maximum(0.0, np.minimum(down, up))
    enorm = 2.0 / (f_pts[2: n_mels + 2] - f_pts[:n_mels])     # slaney area norm
    fb = fb * enorm[None, :]
    return fb.astype(np.float32)                              # (n_freqs, n_mels)


# Effective number of frequency bins: every fb row above the last nonzero row is
# exactly zero (f_max < Nyquist), so truncating the freq axis there is exact.
_FB_FULL_NP = _melscale_fbanks(N_FREQS, MEL_FMIN, MEL_FMAX, N_MELS, SAMPLING_RATE)
_LAST_NONZERO = int(np.max(np.nonzero(_FB_FULL_NP.sum(axis=1) > 0)[0])) + 1
N_FREQS_EFF = int(pl.cdiv(_LAST_NONZERO, 128) * 128)   # 384 for default hparams


def _build_constants():
    """Folded DFT bases (t = 1..N/2) and mel filterbank, as bf16 arrays.

    With the periodic Hann window w (w[t] == w[N-t], w[0] == 0):
      Re X[k] = sum_{t=1..512} w[t] cos(2*pi*t*k/N) * e[t]
      Im X[k] = sum_{t=1..512} w[t] sin(2*pi*t*k/N) * o[t]   (sign dropped; squared)
    where e[t] = x[t]+x[N-t] (t<512), e[512] = x[512]; o[t] = x[t]-x[N-t], o[512]=0.
    """
    n_bins = min(N_FREQS_EFF, N_FREQS)
    n = np.arange(FILTER_LENGTH, dtype=np.float64)
    window = 0.5 - 0.5 * np.cos(2.0 * np.pi * n / WIN_LENGTH)   # periodic Hann
    t = np.arange(1, HALF_N + 1, dtype=np.float64)[:, None]     # (512, 1): t = 1..512
    k = np.arange(n_bins, dtype=np.float64)[None, :]
    ang = 2.0 * np.pi * t * k / FILTER_LENGTH
    w_half = window[1: HALF_N + 1][:, None]                     # w[1..512]
    cos_half = (w_half * np.cos(ang)).astype(np.float32)        # (512, n_bins)
    sin_half = (w_half * np.sin(ang)).astype(np.float32)        # row 512 is all-zero

    pad_f = N_FREQS_EFF - n_bins
    cos_half = np.pad(cos_half, ((0, 0), (0, pad_f)))
    sin_half = np.pad(sin_half, ((0, 0), (0, pad_f)))
    fb = _FB_FULL_NP[:n_bins]                                   # dropped rows are zero
    fb = np.pad(fb, ((0, pad_f), (0, N_MELS_PAD - N_MELS)))     # (N_FREQS_EFF, 128)

    to_bf16 = lambda a: jnp.asarray(a, dtype=jnp.bfloat16)
    return to_bf16(cos_half), to_bf16(sin_half), to_bf16(fb)


# ---------------- Pallas kernel ------------------------------------------------
def mel_kernel(frames_ref, cosb_ref, sinb_ref, fb_ref, inv_norm_ref, out_ref):
    # Folded frame tile: [e half | o half], both 512 wide, bf16.
    fe = frames_ref[:, :HALF_N]                               # (RT, 512)
    fo = frames_ref[:, HALF_N:]                               # (RT, 512)
    # bf16 x bf16 MXU matmuls with explicit f32 accumulation.
    re = jnp.dot(fe, cosb_ref[...], preferred_element_type=jnp.float32)   # (RT, 384)
    im = jnp.dot(fo, sinb_ref[...], preferred_element_type=jnp.float32)   # (RT, 384)
    power = re * re + im * im                                 # |STFT|^2, f32
    mel = jnp.dot(power.astype(jnp.bfloat16), fb_ref[...],
                  preferred_element_type=jnp.float32)         # (RT, 128)
    mel = jnp.log(jnp.maximum(mel, 1e-5))                     # clamp + log (EUP)
    out_ref[...] = mel * inv_norm_ref[...]                    # per-channel norm


@functools.lru_cache(maxsize=1)
def _is_megacore():
    # Only megacore parts (2 TensorCores sharing the grid) benefit from grid>=2.
    try:
        kind = jax.devices()[0].device_kind.lower()
    except Exception:
        return False
    return any(tag in kind for tag in ("v7", "v4", "v5p"))


def _round_up(n, m):
    return pl.cdiv(n, m) * m


def _pick_row_tile(rows):
    # Largest MXU-friendly tile that covers the rows (multiple of 8, <= 512).
    tile = min(MAX_ROW_TILE, _round_up(rows, 8))
    # Only split for megacore chips so both TensorCores get a grid step.
    if _is_megacore() and pl.cdiv(rows, tile) < 2:
        tile = max(8, _round_up(pl.cdiv(rows, 2), 8))
    return tile


def _mel_pallas(folded, cosb, sinb, fb, inv_norms, row_tile):
    rows = folded.shape[0]
    grid = (rows // row_tile,)
    return pl.pallas_call(
        mel_kernel,
        out_shape=jax.ShapeDtypeStruct((rows, N_MELS_PAD), jnp.float32),
        grid_spec=pltpu.PrefetchScalarGridSpec(
            num_scalar_prefetch=0,
            grid=grid,
            in_specs=[
                pl.BlockSpec((row_tile, FILTER_LENGTH), lambda i: (i, 0)),
                pl.BlockSpec((HALF_N, N_FREQS_EFF), lambda i: (0, 0)),
                pl.BlockSpec((HALF_N, N_FREQS_EFF), lambda i: (0, 0)),
                pl.BlockSpec((N_FREQS_EFF, N_MELS_PAD), lambda i: (0, 0)),
                pl.BlockSpec((1, N_MELS_PAD), lambda i: (0, 0)),
            ],
            out_specs=pl.BlockSpec((row_tile, N_MELS_PAD), lambda i: (i, 0)),
        ),
        compiler_params=pltpu.CompilerParams(
            dimension_semantics=("parallel",),
            vmem_limit_bytes=32 << 20,   # fits every generation incl. v7x (64 MiB)
        ),
    )(folded, cosb, sinb, fb, inv_norms)


# ---------------- wrapper (glue: padding, framing, fold, reshapes) -------------
def _frame_signal(x_pad, n_frames):
    """Frame padded audio into (B*G*M, n_fft) rows WITHOUT an XLA gather.

    Because hop*G == n_fft (G=4), frames with index g (mod G) tile the signal
    contiguously: frame (m*G + g) starts at g*hop + m*n_fft.  Rows are produced
    in (g, m) order; the caller un-permutes the (much smaller) kernel output."""
    B = x_pad.shape[0]
    G = FRAMES_PER_HOP_GROUP
    M = pl.cdiv(n_frames, G)
    need = (G - 1) * HOP_LENGTH + M * FILTER_LENGTH
    extra = need - x_pad.shape[1]
    if extra > 0:
        x_pad = jnp.pad(x_pad, ((0, 0), (0, extra)))
    segs = [
        x_pad[:, g * HOP_LENGTH: g * HOP_LENGTH + M * FILTER_LENGTH]
        .reshape(B, M, FILTER_LENGTH)
        for g in range(G)
    ]
    frames = jnp.stack(segs, axis=1)                         # (B, G, M, n_fft)
    return frames.reshape(B * G * M, FILTER_LENGTH), M


def _fold_frames(frames):
    """Hann-symmetry fold: (rows, 1024) f32 -> (rows, 1024) bf16 = [e | o]."""
    a = frames[:, 1:HALF_N]                                  # x[1..511]
    b = jnp.flip(frames[:, HALF_N + 1:], axis=1)             # x[1023..513] = x[N-t]
    mid = frames[:, HALF_N:HALF_N + 1]                       # x[512]
    zero = jnp.zeros_like(mid)
    folded = jnp.concatenate([a + b, mid, a - b, zero], axis=1)   # (rows, 1024)
    return folded.astype(jnp.bfloat16)


def torch_mel_spectrogram(inp, mel_norms, cosb, sinb, fb):
    """Equivalent of TorchMelSpectrogram.forward.

    inp: (B, T) or (B, 1, T) float32 audio. Returns (B, n_mels, n_frames)."""
    if inp.ndim == 3:
        inp = jnp.squeeze(inp, axis=1)
    assert inp.ndim == 2
    B, T = inp.shape
    pad = FILTER_LENGTH // 2
    x = jnp.pad(inp.astype(jnp.float32), ((0, 0), (pad, pad)), mode="reflect")
    n_frames = 1 + T // HOP_LENGTH
    G = FRAMES_PER_HOP_GROUP

    frames, M = _frame_signal(x, n_frames)                   # (B*G*M, n_fft) f32
    folded = _fold_frames(frames)                            # (B*G*M, n_fft) bf16

    rows = folded.shape[0]
    row_tile = _pick_row_tile(rows)
    rows_pad = _round_up(rows, row_tile)
    if rows_pad > rows:
        folded = jnp.pad(folded, ((0, rows_pad - rows), (0, 0)))

    # reciprocal of mel_norms (pad with 1.0), shape (1, n_mels_pad).
    # Note: a zero mel_norm gives inf here, same as the torch division.
    inv_norms = jnp.concatenate(
        [1.0 / mel_norms.astype(jnp.float32),
         jnp.ones((N_MELS_PAD - N_MELS,), jnp.float32)]
    )[None, :]

    out = _mel_pallas(folded, cosb, sinb, fb, inv_norms, row_tile)  # (rows_pad, 128)
    out = out[:rows, :N_MELS].reshape(B, G, M, N_MELS)
    out = jnp.transpose(out, (0, 2, 1, 3)).reshape(B, G * M, N_MELS)  # frame order
    out = out[:, :n_frames, :]
    return jnp.transpose(out, (0, 2, 1))                      # (B, n_mels, n_frames)


if __name__ == "__main__":
    # TODO(synk): mel_norms is normally torch.load()'d; init deterministically instead.
    mel_norms = jnp.linspace(0.5, 1.5, N_MELS, dtype=jnp.float32)

    cosb, sinb, fb = _build_constants()

    # small deterministic input: batch=2, 4096 audio samples -> 17 STFT frames
    key = jax.random.PRNGKey(0)
    x = jax.random.normal(key, (2, 4096), dtype=jnp.float32)

    fn = jax.jit(lambda a: torch_mel_spectrogram(a, mel_norms, cosb, sinb, fb))
    mel = fn(x)
    jax.block_until_ready(mel)
    assert mel.shape == (2, N_MELS, 1 + 4096 // HOP_LENGTH), mel.shape
    assert bool(jnp.all(jnp.isfinite(mel)))
    print("KERNEL_OK")
</pallas_src>

<mosaic_0001>
module attributes {stable_mosaic.version = 11 : i64} {
  func.func @mel_kernel(%arg0: i32, %arg1: memref<40x1024xbf16, #tpu.memory_space<vmem>>, %arg2: memref<512x384xbf16, #tpu.memory_space<vmem>>, %arg3: memref<512x384xbf16, #tpu.memory_space<vmem>>, %arg4: memref<384x128xbf16, #tpu.memory_space<vmem>>, %arg5: memref<1x128xf32, #tpu.memory_space<vmem>>, %arg6: memref<40x128xf32, #tpu.memory_space<vmem>>) attributes {dimension_semantics = [#tpu.dimension_semantics<parallel>], iteration_bounds = array<i64: 1>, scalar_prefetch = 0 : i64, scratch_operands = 0 : i64, tpu.core_type = #tpu.core_type<tc>, window_params = [{transform_indices = @transform_0, window_bounds = array<i64: 40, 1024>}, {pipeline_mode = #tpu.pipeline_mode<synchronous>, transform_indices = @transform_1, window_bounds = array<i64: 512, 384>}, {pipeline_mode = #tpu.pipeline_mode<synchronous>, transform_indices = @transform_2, window_bounds = array<i64: 512, 384>}, {pipeline_mode = #tpu.pipeline_mode<synchronous>, transform_indices = @transform_3, window_bounds = array<i64: 384, 128>}, {pipeline_mode = #tpu.pipeline_mode<synchronous>, transform_indices = @transform_4, window_bounds = array<i64: 1, 128>}, {transform_indices = @transform_5, window_bounds = array<i64: 40, 128>}]} {
    %c0 = arith.constant 0 : index
    %c0_0 = arith.constant 0 : index
    %0 = vector.load %arg1[%c0, %c0_0] : memref<40x1024xbf16, #tpu.memory_space<vmem>>, vector<40x512xbf16>
    %c0_1 = arith.constant 0 : index
    %c512 = arith.constant 512 : index
    %1 = vector.load %arg1[%c0_1, %c512] : memref<40x1024xbf16, #tpu.memory_space<vmem>>, vector<40x512xbf16>
    %c0_2 = arith.constant 0 : index
    %c0_3 = arith.constant 0 : index
    %2 = vector.load %arg2[%c0_2, %c0_3] : memref<512x384xbf16, #tpu.memory_space<vmem>>, vector<512x384xbf16>
    %cst = arith.constant dense<0.000000e+00> : vector<40x384xf32>
    %3 = tpu.matmul %0, %2, %cst {dimension_numbers = #tpu.dot_dimension_numbers<[1], [0], [0], [1], [0, 0, 1, 1], [], []>} : vector<40x512xbf16>, vector<512x384xbf16>, vector<40x384xf32> -> vector<40x384xf32>
    %c0_4 = arith.constant 0 : index
    %c0_5 = arith.constant 0 : index
    %4 = vector.load %arg3[%c0_4, %c0_5] : memref<512x384xbf16, #tpu.memory_space<vmem>>, vector<512x384xbf16>
    %cst_6 = arith.constant dense<0.000000e+00> : vector<40x384xf32>
    %5 = tpu.matmul %1, %4, %cst_6 {dimension_numbers = #tpu.dot_dimension_numbers<[1], [0], [0], [1], [0, 0, 1, 1], [], []>} : vector<40x512xbf16>, vector<512x384xbf16>, vector<40x384xf32> -> vector<40x384xf32>
    %6 = arith.mulf %3, %3 : vector<40x384xf32>
    %7 = arith.mulf %5, %5 : vector<40x384xf32>
    %8 = arith.addf %6, %7 : vector<40x384xf32>
    %9 = arith.truncf %8 : vector<40x384xf32> to vector<40x384xbf16>
    %c0_7 = arith.constant 0 : index
    %c0_8 = arith.constant 0 : index
    %10 = vector.load %arg4[%c0_7, %c0_8] : memref<384x128xbf16, #tpu.memory_space<vmem>>, vector<384x128xbf16>
    %cst_9 = arith.constant dense<0.000000e+00> : vector<40x128xf32>
    %11 = tpu.matmul %9, %10, %cst_9 {dimension_numbers = #tpu.dot_dimension_numbers<[1], [0], [0], [1], [0, 0, 1, 1], [], []>} : vector<40x384xbf16>, vector<384x128xbf16>, vector<40x128xf32> -> vector<40x128xf32>
    %cst_10 = arith.constant 9.99999974E-6 : f32
    %12 = vector.broadcast %cst_10 : f32 to vector<40x128xf32>
    %13 = arith.maximumf %11, %12 : vector<40x128xf32>
    %14 = math.log %13 : vector<40x128xf32>
    %c0_11 = arith.constant 0 : index
    %c0_12 = arith.constant 0 : index
    %15 = vector.load %arg5[%c0_11, %c0_12] : memref<1x128xf32, #tpu.memory_space<vmem>>, vector<1x128xf32>
    %16 = vector.broadcast %15 : vector<1x128xf32> to vector<40x128xf32>
    %17 = arith.mulf %14, %16 : vector<40x128xf32>
    %c0_13 = arith.constant 0 : index
    %c0_14 = arith.constant 0 : index
    %18 = vector.load %arg6[%c0_13, %c0_14] : memref<40x128xf32, #tpu.memory_space<vmem>>, vector<40x128xf32>
    tpu.vector_store %arg6[%c0_13, %c0_14], %17 {strides = array<i32>} : memref<40x128xf32, #tpu.memory_space<vmem>>, vector<40x128xf32>,
    return
  }
  func.func @transform_0(%arg0: i32) -> (i32, i32) {
    %c0_i32 = arith.constant 0 : i32
    %c0_i32_0 = arith.constant 0 : i32
    return %arg0, %c0_i32 : i32, i32
  }
  func.func @transform_1(%arg0: i32) -> (i32, i32) {
    %c0_i32 = arith.constant 0 : i32
    %c0_i32_0 = arith.constant 0 : i32
    %c0_i32_1 = arith.constant 0 : i32
    return %c0_i32, %c0_i32_0 : i32, i32
  }
  func.func @transform_2(%arg0: i32) -> (i32, i32) {
    %c0_i32 = arith.constant 0 : i32
    %c0_i32_0 = arith.constant 0 : i32
    %c0_i32_1 = arith.constant 0 : i32
    return %c0_i32, %c0_i32_0 : i32, i32
  }
  func.func @transform_3(%arg0: i32) -> (i32, i32) {
    %c0_i32 = arith.constant 0 : i32
    %c0_i32_0 = arith.constant 0 : i32
    %c0_i32_1 = arith.constant 0 : i32
    return %c0_i32, %c0_i32_0 : i32, i32
  }
  func.func @transform_4(%arg0: i32) -> (i32, i32) {
    %c0_i32 = arith.constant 0 : i32
    %c0_i32_0 = arith.constant 0 : i32
    %c0_i32_1 = arith.constant 0 : i32
    return %c0_i32, %c0_i32_0 : i32, i32
  }
  func.func @transform_5(%arg0: i32) -> (i32, i32) {
    %c0_i32 = arith.constant 0 : i32
    %c0_i32_0 = arith.constant 0 : i32
    return %arg0, %c0_i32 : i32, i32
  }
}

</mosaic_0001>

<llo_original>
// kernel: reverse
$region0: #{reverse}
  %s0 = inlined_call_operand.vmem [shape: f32[40,512], index: 0, kind: input, shape index: {}]
  %s1 = inlined_call_operand.vmem [shape: f32[40,512], index: 1, kind: output, shape index: {}]
  %v2 = vlaneseq
  %v3 = vsub.s32 127, %v2
  %4 = vset.pattern.permute.xlu0 %v3
  $region1: #{reverse} parent=0
    #allocation0 [shape = 'u8[40960]{0}', space=vmem, size = 0xa000, scoped, tag = 'operand span for operand 0']
    #allocation1 [shape = 'u8[40960]{0}', space=vmem, size = 0xa000, scoped, tag = 'operand span for operand 1']
    loop: start=0, step=1, limit=6
    $region2: #{reverse} parent=1 // loop_pre_header
      _
    $region3: #{reverse} parent=1 // loop_header
      %s6 = sphi 0, %s10
      %p7 = scmp.ge.s32.totalorder %s6, 6
      %s13 = sphi 0, %s25
      %s14 = sphi 0, %s21
      %s15 = sphi 0, %s13
      %s16 = sphi 0, %s14
      %s17 = sphi 0, %s15
      %s18 = sphi 0, %s16
    $region4: #{reverse} parent=1 // loop_header_branch
      %9 = sbr.rel (%p7) target = $region8
    $region5: #{reverse} parent=1 // loop_body
      %s11 = ssub.s32 %s6, 1
      %s12 = ssub.s32 %s6, 2
      %s19 = sadd.s32 1, %s14
      %p20 = scmp.ge.s32.totalorder %s19, 4
      %s21 = scalar_select %p20, 0, %s19
      %s22 = sadd.s32 1, %s13
      %s23 = scalar_select %p20, %s22, %s13
      %p24 = scmp.ge.s32.totalorder %s23, 1
      %s25 = scalar_select %p24, 0, %s23
      %p26 = scmp.le.s32.totalorder 1, %s6
      %p27 = scmp.lt.s32.totalorder %s6, 5
      %p28 = pnand %p26, %p27
      %p29 = pneg %p28
      // Predicated region
      $region9: #{reverse} parent=5 // pred_check
        _
      $region10: #{reverse} parent=5 // pred_check_branch
        %31 = sbr.rel (%p28) target = $region12
      $region11: #{reverse} parent=5 // pred_region
        %s32 = ssub.s32 %s6, 1
      $region12: #{reverse} parent=5 // pred_fallthru
        _
      %p33 = scmp.lt.s32.totalorder %s6, 4
      // Predicated region
      $region13: #{reverse} parent=5 // pred_check
        %p34 = pneg %p33
      $region14: #{reverse} parent=5 // pred_check_branch
        %36 = sbr.rel (%p34) target = $region16
      $region15: #{reverse} parent=5 // pred_region
        %s37 = sand.u32 %s6, 1
        %s38 = sand.u32 %s6, 1
        %s39 = smul.addr %s38, 40
        %s40 = scalar_lea.vmem [#allocation0], %s39
        %s41 = ssub.s32 3, %s14
        %s42 = smul.u32 5, %s13
        %s43 = smul.addr %s42, 4
        %s44 = sadd.s32 %s41, %s43
        %s45 = smul.addr %s44, 8
        %s46 = scalar_lea.vmem %s0, %s45
        // Predicated region
        $region17: #{reverse} parent=15 // pred_check
          _
        $region18: #{reverse} parent=15 // pred_check_branch
          %48 = sbr.rel (0) target = $region20
        $region19: #{reverse} parent=15 // pred_region
          // Predicated region
          $region21: #{reverse} parent=19 // pred_check
            _
          $region22: #{reverse} parent=19 // pred_check_branch
            %50 = sbr.rel (0) target = $region24
          $region23: #{reverse} parent=19 // pred_region
            // Predicated region
            $region36: #{reverse} parent=23 // pred_check
              _
            $region37: #{reverse} parent=23 // pred_check_branch
              %74 = sbr.rel (0) target = $region39
            $region38: #{reverse} parent=23 // pred_region
              loop: start=0, step=1, limit=1
              $region40: #{reverse} parent=38 // loop_pre_header
                _
              $region41: #{reverse} parent=38 // loop_header
                %s76 = sphi 0, %s80
                %p77 = scmp.ge.s32.totalorder %s76, 1
                %s81 = sphi %s46, %s46
                %s82 = sphi %s40, %s40
              $region42: #{reverse} parent=38 // loop_header_branch
                %79 = sbr.rel (%p77) target = $region46
              $region43: #{reverse} parent=38 // loop_body
                %v83 = vld [vmem:[%s81] sm:$0xff]
                %84 = vst [vmem:[%s82] sm:$0xff] %v83
                %v85 = vld [vmem:[%s81 + $0x20] sm:$0xff]
                %86 = vst [vmem:[%s82 + $0x8] sm:$0xff] %v85
                %v87 = vld [vmem:[%s81 + $0x40] sm:$0xff]
                %88 = vst [vmem:[%s82 + $0x10] sm:$0xff] %v87
                %v89 = vld [vmem:[%s81 + $0x60] sm:$0xff]
                %90 = vst [vmem:[%s82 + $0x18] sm:$0xff] %v89
                %v91 = vld [vmem:[%s81 + $0x80] sm:$0xff]
                %92 = vst [vmem:[%s82 + $0x20] sm:$0xff] %v91
              $region44: #{reverse} parent=38 // loop_footer
                %s80 = sadd.s32 1, %s76
              $region45: #{reverse} parent=38 // loop_footer_branch
                %75 = sbr.rel target = $region41
              $region46: #{reverse} parent=38 // loop_exit
                _
            $region39: #{reverse} parent=23 // pred_fallthru
              _
            // Predicated region
            $region47: #{reverse} parent=23 // pred_check
              _
            $region48: #{reverse} parent=23 // pred_check_branch
              %94 = sbr.rel target = $region50
            $region49: #{reverse} parent=23 // pred_region
              _
            $region50: #{reverse} parent=23 // pred_fallthru
              _
          $region24: #{reverse} parent=19 // pred_fallthru
            _
          // Predicated region
          $region25: #{reverse} parent=19 // pred_check
            _
          $region26: #{reverse} parent=19 // pred_check_branch
            %52 = sbr.rel target = $region28
          $region27: #{reverse} parent=19 // pred_region
            %s54 = ssub.s32 256, 1
            loop: start=0, step=1, limit=1
            $region29: #{reverse} parent=27 // loop_pre_header
              _
            $region30: #{reverse} parent=27 // loop_header
              %s56 = sphi 0, %s60
              %p57 = scmp.ge.s32.totalorder %s56, 1
              %s61 = sphi %s46, %s46
              %s62 = sphi %s40, %s40
            $region31: #{reverse} parent=27 // loop_header_branch
              %59 = sbr.rel (%p57) target = $region35
            $region32: #{reverse} parent=27 // loop_body
              %v63 = vld [vmem:[%s61] sm:%s54]
              %64 = vst [vmem:[%s62] sm:%s54] %v63
              %v65 = vld [vmem:[%s61 + $0x20] sm:%s54]
              %66 = vst [vmem:[%s62 + $0x8] sm:%s54] %v65
              %v67 = vld [vmem:[%s61 + $0x40] sm:%s54]
              %68 = vst [vmem:[%s62 + $0x10] sm:%s54] %v67
              %v69 = vld [vmem:[%s61 + $0x60] sm:%s54]
              %70 = vst [vmem:[%s62 + $0x18] sm:%s54] %v69
              %v71 = vld [vmem:[%s61 + $0x80] sm:%s54]
              %72 = vst [vmem:[%s62 + $0x20] sm:%s54] %v71
            $region33: #{reverse} parent=27 // loop_footer
              %s60 = sadd.s32 1, %s56
            $region34: #{reverse} parent=27 // loop_footer_branch
              %55 = sbr.rel target = $region30
            $region35: #{reverse} parent=27 // loop_exit
              _
          $region28: #{reverse} parent=19 // pred_fallthru
            _
        $region20: #{reverse} parent=15 // pred_fallthru
          _
        %95 = vnop
      $region16: #{reverse} parent=5 // pred_fallthru
        _
      %p96 = scmp.le.s32.totalorder 1, %s6
      %p97 = scmp.lt.s32.totalorder %s6, 5
      %p98 = pnand %p96, %p97
      %p99 = pneg %p98
      // Predicated region
      $region51: #{reverse} parent=5 // pred_check
        _
      $region52: #{reverse} parent=5 // pred_check_branch
        %101 = sbr.rel (%p98) target = $region54
      $region53: #{reverse} parent=5 // pred_region
        %s102 = ssub.s32 %s6, 1
        %s103 = sand.u32 %s11, 1
        %s104 = sand.u32 %s11, 1
        %s105 = smul.addr %s104, 40
        %s106 = scalar_lea.vmem [#allocation0], %s105
        %s107 = sand.u32 %s11, 1
        %s108 = sand.u32 %s11, 1
        %s109 = smul.addr %s108, 40
        %s110 = scalar_lea.vmem [#allocation0], %s109
        %s111 = sand.u32 %s11, 1
        %s112 = sand.u32 %s11, 1
        %s113 = smul.addr %s112, 40
        %s114 = scalar_lea.vmem [#allocation1], %s113
        %s115 = ssub.s32 3, %s16
        %s116 = smul.u32 5, %s15
        %s117 = smul.u32 5, %s15
        %v118 = vld [vmem:[%s106] sm:$0xff]
        %119 = vperm.xlu0 %4, %v118
        %v120 = vpop.permute.xlu0 %119
        %121 = vst [vmem:[%s114] sm:$0xff] %v120
        %s122 = scalar_lea.vmem %s114, 8 [#allocation1]
        %s123 = scalar_lea.vmem %s106, 8 [#allocation0]
        %v124 = vld [vmem:[%s123] sm:$0xff]
        %125 = vperm.xlu0 %4, %v124
        %v126 = vpop.permute.xlu0 %125
        %127 = vst [vmem:[%s122] sm:$0xff] %v126
        %s128 = scalar_lea.vmem %s114, 16 [#allocation1]
        %s129 = scalar_lea.vmem %s106, 16 [#allocation0]
        %v130 = vld [vmem:[%s129] sm:$0xff]
        %131 = vperm.xlu0 %4, %v130
        %v132 = vpop.permute.xlu0 %131
        %133 = vst [vmem:[%s128] sm:$0xff] %v132
        %s134 = scalar_lea.vmem %s114, 24 [#allocation1]
        %s135 = scalar_lea.vmem %s106, 24 [#allocation0]
        %v136 = vld [vmem:[%s135] sm:$0xff]
        %137 = vperm.xlu0 %4, %v136
        %v138 = vpop.permute.xlu0 %137
        %139 = vst [vmem:[%s134] sm:$0xff] %v138
        %s140 = scalar_lea.vmem %s114, 32 [#allocation1]
        %s141 = scalar_lea.vmem %s106, 32 [#allocation0]
        %v142 = vld [vmem:[%s141] sm:$0xff]
        %143 = vperm.xlu0 %4, %v142
        %v144 = vpop.permute.xlu0 %143
        %145 = vst [vmem:[%s140] sm:$0xff] %v144
        %s146 = sand.u32 %s11, 1
        %s147 = sand.u32 %s11, 1
        %s148 = smul.addr %s147, 40
        %s149 = scalar_lea.vmem [#allocation1], %s148
        %s150 = smul.u32 5, %s15
        %s151 = smul.addr %s150, 4
        %s152 = sadd.s32 %s16, %s151
        %s153 = smul.addr %s152, 8
        %s154 = scalar_lea.vmem %s1, %s153
        // Predicated region
        $region55: #{reverse} parent=53 // pred_check
          _
        $region56: #{reverse} parent=53 // pred_check_branch
          %156 = sbr.rel (0) target = $region58
        $region57: #{reverse} parent=53 // pred_region
          // Predicated region
          $region59: #{reverse} parent=57 // pred_check
            _
          $region60: #{reverse} parent=57 // pred_check_branch
            %158 = sbr.rel (0) target = $region62
          $region61: #{reverse} parent=57 // pred_region
            // Predicated region
            $region74: #{reverse} parent=61 // pred_check
              _
            $region75: #{reverse} parent=61 // pred_check_branch
              %182 = sbr.rel (0) target = $region77
            $region76: #{reverse} parent=61 // pred_region
              loop: start=0, step=1, limit=1
              $region78: #{reverse} parent=76 // loop_pre_header
                _
              $region79: #{reverse} parent=76 // loop_header
                %s184 = sphi 0, %s188
                %p185 = scmp.ge.s32.totalorder %s184, 1
                %s189 = sphi %s149, %s149
                %s190 = sphi %s154, %s154
              $region80: #{reverse} parent=76 // loop_header_branch
                %187 = sbr.rel (%p185) target = $region84
              $region81: #{reverse} parent=76 // loop_body
                %v191 = vld [vmem:[%s189] sm:$0xff]
                %192 = vst [vmem:[%s190] sm:$0xff] %v191
                %v193 = vld [vmem:[%s189 + $0x8] sm:$0xff]
                %194 = vst [vmem:[%s190 + $0x20] sm:$0xff] %v193
                %v195 = vld [vmem:[%s189 + $0x10] sm:$0xff]
                %196 = vst [vmem:[%s190 + $0x40] sm:$0xff] %v195
                %v197 = vld [vmem:[%s189 + $0x18] sm:$0xff]
                %198 = vst [vmem:[%s190 + $0x60] sm:$0xff] %v197
                %v199 = vld [vmem:[%s189 + $0x20] sm:$0xff]
                %200 = vst [vmem:[%s190 + $0x80] sm:$0xff] %v199
              $region82: #{reverse} parent=76 // loop_footer
                %s188 = sadd.s32 1, %s184
              $region83: #{reverse} parent=76 // loop_footer_branch
                %183 = sbr.rel target = $region79
              $region84: #{reverse} parent=76 // loop_exit
                _
            $region77: #{reverse} parent=61 // pred_fallthru
              _
            // Predicated region
            $region85: #{reverse} parent=61 // pred_check
              _
            $region86: #{reverse} parent=61 // pred_check_branch
              %202 = sbr.rel target = $region88
            $region87: #{reverse} parent=61 // pred_region
              _
            $region88: #{reverse} parent=61 // pred_fallthru
              _
          $region62: #{reverse} parent=57 // pred_fallthru
            _
          // Predicated region
          $region63: #{reverse} parent=57 // pred_check
            _
          $region64: #{reverse} parent=57 // pred_check_branch
            %160 = sbr.rel target = $region66
          $region65: #{reverse} parent=57 // pred_region
            %s162 = ssub.s32 256, 1
            loop: start=0, step=1, limit=1
            $region67: #{reverse} parent=65 // loop_pre_header
              _
            $region68: #{reverse} parent=65 // loop_header
              %s164 = sphi 0, %s168
              %p165 = scmp.ge.s32.totalorder %s164, 1
              %s169 = sphi %s149, %s149
              %s170 = sphi %s154, %s154
            $region69: #{reverse} parent=65 // loop_header_branch
              %167 = sbr.rel (%p165) target = $region73
            $region70: #{reverse} parent=65 // loop_body
              %v171 = vld [vmem:[%s169] sm:%s162]
              %172 = vst [vmem:[%s170] sm:%s162] %v171
              %v173 = vld [vmem:[%s169 + $0x8] sm:%s162]
              %174 = vst [vmem:[%s170 + $0x20] sm:%s162] %v173
              %v175 = vld [vmem:[%s169 + $0x10] sm:%s162]
              %176 = vst [vmem:[%s170 + $0x40] sm:%s162] %v175
              %v177 = vld [vmem:[%s169 + $0x18] sm:%s162]
              %178 = vst [vmem:[%s170 + $0x60] sm:%s162] %v177
              %v179 = vld [vmem:[%s169 + $0x20] sm:%s162]
              %180 = vst [vmem:[%s170 + $0x80] sm:%s162] %v179
            $region71: #{reverse} parent=65 // loop_footer
              %s168 = sadd.s32 1, %s164
            $region72: #{reverse} parent=65 // loop_footer_branch
              %163 = sbr.rel target = $region68
            $region73: #{reverse} parent=65 // loop_exit
              _
          $region66: #{reverse} parent=57 // pred_fallthru
            _
        $region58: #{reverse} parent=53 // pred_fallthru
          _
        %203 = vnop
      $region54: #{reverse} parent=5 // pred_fallthru
        _
      %p204 = scmp.le.s32.totalorder 2, %s6
      // Predicated region
      $region89: #{reverse} parent=5 // pred_check
        %p205 = pneg %p204
      $region90: #{reverse} parent=5 // pred_check_branch
        %207 = sbr.rel (%p205) target = $region92
      $region91: #{reverse} parent=5 // pred_region
        %s208 = ssub.s32 %s6, 2
        %s209 = sand.u32 %s12, 1
        %s210 = sand.u32 %s12, 1
        %s211 = smul.addr %s210, 40
        %s212 = scalar_lea.vmem [#allocation1], %s211
      $region92: #{reverse} parent=5 // pred_fallthru
        _
    $region6: #{reverse} parent=1 // loop_footer
      %s10 = sadd.s32 1, %s6
    $region7: #{reverse} parent=1 // loop_footer_branch
      %5 = sbr.rel target = $region3
    $region8: #{reverse} parent=1 // loop_exit
      _

// kernel: _lambda_.1
$region0: #{_lambda_.1}
  #allocation0 [shape = 'u32[]', space=smem, size = 0x4, offset = 0x4, fixed_abs, tag = 'smem constant byte address 0x4 - core index']
  #allocation1 [shape = 'u32[144,128]{1,0:T(1,128)}', space=vmem, size = 0x12000, scoped, tag = 'internal scratch']
  %s0 = inlined_call_operand.vmem [shape: bf16[40,1024], index: 0, kind: input, shape index: {}]
  %s1 = inlined_call_operand.vmem [shape: bf16[512,384], index: 1, kind: input, shape index: {}]
  %s2 = inlined_call_operand.vmem [shape: bf16[512,384], index: 2, kind: input, shape index: {}]
  %s3 = inlined_call_operand.vmem [shape: bf16[384,128], index: 3, kind: input, shape index: {}]
  %s4 = inlined_call_operand.vmem [shape: f32[1,128], index: 4, kind: input, shape index: {}]
  %s5 = inlined_call_operand.vmem [shape: f32[40,128], index: 5, kind: output, shape index: {}]
  %s6 = sld [smem:[#allocation0]]
  $region30: #{_lambda_.1} parent=0
    _
  %s8 = ssub.s32 1, %s6
  %s9 = scalar_select 0, %s8, %s6
  // Predicated region
  $region2: #{_lambda_.1} parent=0 // pred_check
    _
  $region3: #{_lambda_.1} parent=0 // pred_check_branch
    %11 = sbr.rel (0) target = $region5
  $region4: #{_lambda_.1} parent=0 // pred_region
    _
  $region5: #{_lambda_.1} parent=0 // pred_fallthru
    _
  // Predicated region
  $region6: #{_lambda_.1} parent=0 // pred_check
    _
  $region7: #{_lambda_.1} parent=0 // pred_check_branch
    %13 = sbr.rel (0) target = $region9
  $region8: #{_lambda_.1} parent=0 // pred_region
    _
  $region9: #{_lambda_.1} parent=0 // pred_fallthru
    _
  // Predicated region
  $region10: #{_lambda_.1} parent=0 // pred_check
    _
  $region11: #{_lambda_.1} parent=0 // pred_check_branch
    %15 = sbr.rel (0) target = $region13
  $region12: #{_lambda_.1} parent=0 // pred_region
    _
  $region13: #{_lambda_.1} parent=0 // pred_fallthru
    _
  // Predicated region
  $region14: #{_lambda_.1} parent=0 // pred_check
    _
  $region15: #{_lambda_.1} parent=0 // pred_check_branch
    %17 = sbr.rel (0) target = $region17
  $region16: #{_lambda_.1} parent=0 // pred_region
    _
  $region17: #{_lambda_.1} parent=0 // pred_fallthru
    _
  // Predicated region
  $region18: #{_lambda_.1} parent=0 // pred_check
    _
  $region19: #{_lambda_.1} parent=0 // pred_check_branch
    %19 = sbr.rel (0) target = $region21
  $region20: #{_lambda_.1} parent=0 // pred_region
    _
  $region21: #{_lambda_.1} parent=0 // pred_fallthru
    _
  %v21 = vld [vmem:[%s0] sm:$0xff]
  %v22 = vld [vmem:[%s0 + $0x8] sm:$0xff]
  %v23 = vld [vmem:[%s0 + $0x20] sm:$0xff]
  %v24 = vld [vmem:[%s0 + $0x28] sm:$0xff]
  %v25 = vld [vmem:[%s0 + $0x40] sm:$0xff]
  %v26 = vld [vmem:[%s0 + $0x48] sm:$0xff]
  %v27 = vld [vmem:[%s0 + $0x60] sm:$0xff]
  %v28 = vld [vmem:[%s0 + $0x68] sm:$0xff]
  %v29 = vld [vmem:[%s0 + $0x80] sm:$0xff]
  %v30 = vld [vmem:[%s0 + $0x88] sm:$0xff]
  %v31 = vld [vmem:[%s0 + $0x10] sm:$0xff]
  %v32 = vld [vmem:[%s0 + $0x18] sm:$0xff]
  %v33 = vld [vmem:[%s0 + $0x30] sm:$0xff]
  %v34 = vld [vmem:[%s0 + $0x38] sm:$0xff]
  %v35 = vld [vmem:[%s0 + $0x50] sm:$0xff]
  %v36 = vld [vmem:[%s0 + $0x58] sm:$0xff]
  %v37 = vld [vmem:[%s0 + $0x70] sm:$0xff]
  %v38 = vld [vmem:[%s0 + $0x78] sm:$0xff]
  %v39 = vld [vmem:[%s0 + $0x90] sm:$0xff]
  %v40 = vld [vmem:[%s0 + $0x98] sm:$0xff]
  %v41 = vld [vmem:[%s1] sm:$0xff]
  %v42 = vld [vmem:[%s1 + $0x8] sm:$0xf]
  %v43 = vld [vmem:[%s1 + $0xc] sm:$0xff]
  %v44 = vld [vmem:[%s1 + $0x14] sm:$0xf]
  %v45 = vld [vmem:[%s1 + $0x18] sm:$0xff]
  %v46 = vld [vmem:[%s1 + $0x20] sm:$0xf]
  %v47 = vld [vmem:[%s1 + $0x24] sm:$0xff]
  %v48 = vld [vmem:[%s1 + $0x2c] sm:$0xf]
  %v49 = vld [vmem:[%s1 + $0x30] sm:$0xff]
  %v50 = vld [vmem:[%s1 + $0x38] sm:$0xf]
  %v51 = vld [vmem:[%s1 + $0x3c] sm:$0xff]
  %v52 = vld [vmem:[%s1 + $0x44] sm:$0xf]
  %v53 = vld [vmem:[%s1 + $0x48] sm:$0xff]
  %v54 = vld [vmem:[%s1 + $0x50] sm:$0xf]
  %v55 = vld [vmem:[%s1 + $0x54] sm:$0xff]
  %v56 = vld [vmem:[%s1 + $0x5c] sm:$0xf]
  %v57 = vld [vmem:[%s1 + $0x60] sm:$0xff]
  %v58 = vld [vmem:[%s1 + $0x68] sm:$0xf]
  %v59 = vld [vmem:[%s1 + $0x6c] sm:$0xff]
  %v60 = vld [vmem:[%s1 + $0x74] sm:$0xf]
  %v61 = vld [vmem:[%s1 + $0x78] sm:$0xff]
  %v62 = vld [vmem:[%s1 + $0x80] sm:$0xf]
  %v63 = vld [vmem:[%s1 + $0x84] sm:$0xff]
  %v64 = vld [vmem:[%s1 + $0x8c] sm:$0xf]
  %v65 = vld [vmem:[%s1 + $0x90] sm:$0xff]
  %v66 = vld [vmem:[%s1 + $0x98] sm:$0xf]
  %v67 = vld [vmem:[%s1 + $0x9c] sm:$0xff]
  %v68 = vld [vmem:[%s1 + $0xa4] sm:$0xf]
  %v69 = vld [vmem:[%s1 + $0xa8] sm:$0xff]
  %v70 = vld [vmem:[%s1 + $0xb0] sm:$0xf]
  %v71 = vld [vmem:[%s1 + $0xb4] sm:$0xff]
  %v72 = vld [vmem:[%s1 + $0xbc] sm:$0xf]
  %v73 = vld [vmem:[%s1 + $0xc0] sm:$0xff]
  %v74 = vld [vmem:[%s1 + $0xc8] sm:$0xf]
  %v75 = vld [vmem:[%s1 + $0xcc] sm:$0xff]
  %v76 = vld [vmem:[%s1 + $0xd4] sm:$0xf]
  %v77 = vld [vmem:[%s1 + $0xd8] sm:$0xff]
  %v78 = vld [vmem:[%s1 + $0xe0] sm:$0xf]
  %v79 = vld [vmem:[%s1 + $0xe4] sm:$0xff]
  %v80 = vld [vmem:[%s1 + $0xec] sm:$0xf]
  %v81 = vld [vmem:[%s1 + $0xf0] sm:$0xff]
  %v82 = vld [vmem:[%s1 + $0xf8] sm:$0xf]
  %v83 = vld [vmem:[%s1 + $0xfc] sm:$0xff]
  %v84 = vld [vmem:[%s1 + $0x104] sm:$0xf]
  %v85 = vld [vmem:[%s1 + $0x108] sm:$0xff]
  %v86 = vld [vmem:[%s1 + $0x110] sm:$0xf]
  %v87 = vld [vmem:[%s1 + $0x114] sm:$0xff]
  %v88 = vld [vmem:[%s1 + $0x11c] sm:$0xf]
  %v89 = vld [vmem:[%s1 + $0x120] sm:$0xff]
  %v90 = vld [vmem:[%s1 + $0x128] sm:$0xf]
  %v91 = vld [vmem:[%s1 + $0x12c] sm:$0xff]
  %v92 = vld [vmem:[%s1 + $0x134] sm:$0xf]
  %v93 = vld [vmem:[%s1 + $0x138] sm:$0xff]
  %v94 = vld [vmem:[%s1 + $0x140] sm:$0xf]
  %v95 = vld [vmem:[%s1 + $0x144] sm:$0xff]
  %v96 = vld [vmem:[%s1 + $0x14c] sm:$0xf]
  %v97 = vld [vmem:[%s1 + $0x150] sm:$0xff]
  %v98 = vld [vmem:[%s1 + $0x158] sm:$0xf]
  %v99 = vld [vmem:[%s1 + $0x15c] sm:$0xff]
  %v100 = vld [vmem:[%s1 + $0x164] sm:$0xf]
  %v101 = vld [vmem:[%s1 + $0x168] sm:$0xff]
  %v102 = vld [vmem:[%s1 + $0x170] sm:$0xf]
  %v103 = vld [vmem:[%s1 + $0x174] sm:$0xff]
  %v104 = vld [vmem:[%s1 + $0x17c] sm:$0xf]
  %v105 = vld [vmem:[%s1 + $0x180] sm:$0xff]
  %v106 = vld [vmem:[%s1 + $0x188] sm:$0xf]
  %v107 = vld [vmem:[%s1 + $0x18c] sm:$0xff]
  %v108 = vld [vmem:[%s1 + $0x194] sm:$0xf]
  %v109 = vld [vmem:[%s1 + $0x198] sm:$0xff]
  %v110 = vld [vmem:[%s1 + $0x1a0] sm:$0xf]
  %v111 = vld [vmem:[%s1 + $0x1a4] sm:$0xff]
  %v112 = vld [vmem:[%s1 + $0x1ac] sm:$0xf]
  %v113 = vld [vmem:[%s1 + $0x1b0] sm:$0xff]
  %v114 = vld [vmem:[%s1 + $0x1b8] sm:$0xf]
  %v115 = vld [vmem:[%s1 + $0x1bc] sm:$0xff]
  %v116 = vld [vmem:[%s1 + $0x1c4] sm:$0xf]
  %v117 = vld [vmem:[%s1 + $0x1c8] sm:$0xff]
  %v118 = vld [vmem:[%s1 + $0x1d0] sm:$0xf]
  %v119 = vld [vmem:[%s1 + $0x1d4] sm:$0xff]
  %v120 = vld [vmem:[%s1 + $0x1dc] sm:$0xf]
  %v121 = vld [vmem:[%s1 + $0x1e0] sm:$0xff]
  %v122 = vld [vmem:[%s1 + $0x1e8] sm:$0xf]
  %v123 = vld [vmem:[%s1 + $0x1ec] sm:$0xff]
  %v124 = vld [vmem:[%s1 + $0x1f4] sm:$0xf]
  %v125 = vld [vmem:[%s1 + $0x1f8] sm:$0xff]
  %v126 = vld [vmem:[%s1 + $0x200] sm:$0xf]
  %v127 = vld [vmem:[%s1 + $0x204] sm:$0xff]
  %v128 = vld [vmem:[%s1 + $0x20c] sm:$0xf]
  %v129 = vld [vmem:[%s1 + $0x210] sm:$0xff]
  %v130 = vld [vmem:[%s1 + $0x218] sm:$0xf]
  %v131 = vld [vmem:[%s1 + $0x21c] sm:$0xff]
  %v132 = vld [vmem:[%s1 + $0x224] sm:$0xf]
  %v133 = vld [vmem:[%s1 + $0x228] sm:$0xff]
  %v134 = vld [vmem:[%s1 + $0x230] sm:$0xf]
  %v135 = vld [vmem:[%s1 + $0x234] sm:$0xff]
  %v136 = vld [vmem:[%s1 + $0x23c] sm:$0xf]
  %v137 = vld [vmem:[%s1 + $0x240] sm:$0xff]
  %v138 = vld [vmem:[%s1 + $0x248] sm:$0xf]
  %v139 = vld [vmem:[%s1 + $0x24c] sm:$0xff]
  %v140 = vld [vmem:[%s1 + $0x254] sm:$0xf]
  %v141 = vld [vmem:[%s1 + $0x258] sm:$0xff]
  %v142 = vld [vmem:[%s1 + $0x260] sm:$0xf]
  %v143 = vld [vmem:[%s1 + $0x264] sm:$0xff]
  %v144 = vld [vmem:[%s1 + $0x26c] sm:$0xf]
  %v145 = vld [vmem:[%s1 + $0x270] sm:$0xff]
  %v146 = vld [vmem:[%s1 + $0x278] sm:$0xf]
  %v147 = vld [vmem:[%s1 + $0x27c] sm:$0xff]
  %v148 = vld [vmem:[%s1 + $0x284] sm:$0xf]
  %v149 = vld [vmem:[%s1 + $0x288] sm:$0xff]
  %v150 = vld [vmem:[%s1 + $0x290] sm:$0xf]
  %v151 = vld [vmem:[%s1 + $0x294] sm:$0xff]
  %v152 = vld [vmem:[%s1 + $0x29c] sm:$0xf]
  %v153 = vld [vmem:[%s1 + $0x2a0] sm:$0xff]
  %v154 = vld [vmem:[%s1 + $0x2a8] sm:$0xf]
  %v155 = vld [vmem:[%s1 + $0x2ac] sm:$0xff]
  %v156 = vld [vmem:[%s1 + $0x2b4] sm:$0xf]
  %v157 = vld [vmem:[%s1 + $0x2b8] sm:$0xff]
  %v158 = vld [vmem:[%s1 + $0x2c0] sm:$0xf]
  %v159 = vld [vmem:[%s1 + $0x2c4] sm:$0xff]
  %v160 = vld [vmem:[%s1 + $0x2cc] sm:$0xf]
  %v161 = vld [vmem:[%s1 + $0x2d0] sm:$0xff]
  %v162 = vld [vmem:[%s1 + $0x2d8] sm:$0xf]
  %v163 = vld [vmem:[%s1 + $0x2dc] sm:$0xff]
  %v164 = vld [vmem:[%s1 + $0x2e4] sm:$0xf]
  %v165 = vld [vmem:[%s1 + $0x2e8] sm:$0xff]
  %v166 = vld [vmem:[%s1 + $0x2f0] sm:$0xf]
  %v167 = vld [vmem:[%s1 + $0x2f4] sm:$0xff]
  %v168 = vld [vmem:[%s1 + $0x2fc] sm:$0xf]
  %v179 = vunpack.c.l.b16 %v21
  %v180 = vunpack.c.h.b16 %v21
  %v181 = vunpack.c.l.b16 %v22
  %v182 = vunpack.c.h.b16 %v22
  %v183 = vunpack.c.l.b16 %v23
  %v184 = vunpack.c.h.b16 %v23
  %v185 = vunpack.c.l.b16 %v24
  %v186 = vunpack.c.h.b16 %v24
  %v187 = vunpack.c.l.b16 %v25
  %v188 = vunpack.c.h.b16 %v25
  %v189 = vunpack.c.l.b16 %v26
  %v190 = vunpack.c.h.b16 %v26
  %v191 = vunpack.c.l.b16 %v27
  %v192 = vunpack.c.h.b16 %v27
  %v193 = vunpack.c.l.b16 %v28
  %v194 = vunpack.c.h.b16 %v28
  %v195 = vunpack.c.l.b16 %v29
  %v196 = vunpack.c.h.b16 %v29
  %v197 = vunpack.c.l.b16 %v30
  %v198 = vunpack.c.h.b16 %v30
  %v199 = vpack.c.b16 %v183, %v179
  %v200 = vpack.c.b16 %v184, %v180
  %v201 = vpack.c.b16 %v185, %v181
  %v202 = vpack.c.b16 %v186, %v182
  %v203 = vpack.c.b16 %v191, %v187
  %v204 = vpack.c.b16 %v192, %v188
  %v205 = vpack.c.b16 %v193, %v189
  %v206 = vpack.c.b16 %v194, %v190
  %v207 = vpack.c.b16 %v195, %v195
  %v208 = vpack.c.b16 %v196, %v196
  %v209 = vpack.c.b16 %v197, %v197
  %v210 = vpack.c.b16 %v198, %v198
  %v351 = vunpack.c.l.b16 %v41
  %v352 = vunpack.c.h.b16 %v41
  %v353 = vunpack.c.l.b16 %v42
  %v354 = vunpack.c.l.b16 %v43
  %v355 = vunpack.c.h.b16 %v43
  %v356 = vunpack.c.l.b16 %v44
  %v357 = vunpack.c.l.b16 %v45
  %v358 = vunpack.c.h.b16 %v45
  %v359 = vunpack.c.l.b16 %v46
  %v360 = vunpack.c.l.b16 %v47
  %v361 = vunpack.c.h.b16 %v47
  %v362 = vunpack.c.l.b16 %v48
  %v363 = vunpack.c.l.b16 %v49
  %v364 = vunpack.c.h.b16 %v49
  %v365 = vunpack.c.l.b16 %v50
  %v366 = vunpack.c.l.b16 %v51
  %v367 = vunpack.c.h.b16 %v51
  %v368 = vunpack.c.l.b16 %v52
  %v369 = vunpack.c.l.b16 %v53
  %v370 = vunpack.c.h.b16 %v53
  %v371 = vunpack.c.l.b16 %v54
  %v372 = vunpack.c.l.b16 %v55
  %v373 = vunpack.c.h.b16 %v55
  %v374 = vunpack.c.l.b16 %v56
  %v375 = vunpack.c.l.b16 %v57
  %v376 = vunpack.c.h.b16 %v57
  %v377 = vunpack.c.l.b16 %v58
  %v378 = vunpack.c.l.b16 %v59
  %v379 = vunpack.c.h.b16 %v59
  %v380 = vunpack.c.l.b16 %v60
  %v381 = vunpack.c.l.b16 %v61
  %v382 = vunpack.c.h.b16 %v61
  %v383 = vunpack.c.l.b16 %v62
  %v384 = vunpack.c.l.b16 %v63
  %v385 = vunpack.c.h.b16 %v63
  %v386 = vunpack.c.l.b16 %v64
  %v387 = vunpack.c.l.b16 %v65
  %v388 = vunpack.c.h.b16 %v65
  %v389 = vunpack.c.l.b16 %v66
  %v390 = vunpack.c.l.b16 %v67
  %v391 = vunpack.c.h.b16 %v67
  %v392 = vunpack.c.l.b16 %v68
  %v393 = vunpack.c.l.b16 %v69
  %v394 = vunpack.c.h.b16 %v69
  %v395 = vunpack.c.l.b16 %v70
  %v396 = vunpack.c.l.b16 %v71
  %v397 = vunpack.c.h.b16 %v71
  %v398 = vunpack.c.l.b16 %v72
  %v399 = vunpack.c.l.b16 %v73
  %v400 = vunpack.c.h.b16 %v73
  %v401 = vunpack.c.l.b16 %v74
  %v402 = vunpack.c.l.b16 %v75
  %v403 = vunpack.c.h.b16 %v75
  %v404 = vunpack.c.l.b16 %v76
  %v405 = vunpack.c.l.b16 %v77
  %v406 = vunpack.c.h.b16 %v77
  %v407 = vunpack.c.l.b16 %v78
  %v408 = vunpack.c.l.b16 %v79
  %v409 = vunpack.c.h.b16 %v79
  %v410 = vunpack.c.l.b16 %v80
  %v411 = vunpack.c.l.b16 %v81
  %v412 = vunpack.c.h.b16 %v81
  %v413 = vunpack.c.l.b16 %v82
  %v414 = vunpack.c.l.b16 %v83
  %v415 = vunpack.c.h.b16 %v83
  %v416 = vunpack.c.l.b16 %v84
  %v417 = vunpack.c.l.b16 %v85
  %v418 = vunpack.c.h.b16 %v85
  %v419 = vunpack.c.l.b16 %v86
  %v420 = vunpack.c.l.b16 %v87
  %v421 = vunpack.c.h.b16 %v87
  %v422 = vunpack.c.l.b16 %v88
  %v423 = vunpack.c.l.b16 %v89
  %v424 = vunpack.c.h.b16 %v89
  %v425 = vunpack.c.l.b16 %v90
  %v426 = vunpack.c.l.b16 %v91
  %v427 = vunpack.c.h.b16 %v91
  %v428 = vunpack.c.l.b16 %v92
  %v429 = vunpack.c.l.b16 %v93
  %v430 = vunpack.c.h.b16 %v93
  %v431 = vunpack.c.l.b16 %v94
  %v432 = vunpack.c.l.b16 %v95
  %v433 = vunpack.c.h.b16 %v95
  %v434 = vunpack.c.l.b16 %v96
  %v435 = vunpack.c.l.b16 %v97
  %v436 = vunpack.c.h.b16 %v97
  %v437 = vunpack.c.l.b16 %v98
  %v438 = vunpack.c.l.b16 %v99
  %v439 = vunpack.c.h.b16 %v99
  %v440 = vunpack.c.l.b16 %v100
  %v441 = vunpack.c.l.b16 %v101
  %v442 = vunpack.c.h.b16 %v101
  %v443 = vunpack.c.l.b16 %v102
  %v444 = vunpack.c.l.b16 %v103
  %v445 = vunpack.c.h.b16 %v103
  %v446 = vunpack.c.l.b16 %v104
  %v447 = vunpack.c.l.b16 %v105
  %v448 = vunpack.c.h.b16 %v105
  %v449 = vunpack.c.l.b16 %v106
  %v450 = vunpack.c.l.b16 %v107
  %v451 = vunpack.c.h.b16 %v107
  %v452 = vunpack.c.l.b16 %v108
  %v453 = vunpack.c.l.b16 %v109
  %v454 = vunpack.c.h.b16 %v109
  %v455 = vunpack.c.l.b16 %v110
  %v456 = vunpack.c.l.b16 %v111
  %v457 = vunpack.c.h.b16 %v111
  %v458 = vunpack.c.l.b16 %v112
  %v459 = vunpack.c.l.b16 %v113
  %v460 = vunpack.c.h.b16 %v113
  %v461 = vunpack.c.l.b16 %v114
  %v462 = vunpack.c.l.b16 %v115
  %v463 = vunpack.c.h.b16 %v115
  %v464 = vunpack.c.l.b16 %v116
  %v465 = vunpack.c.l.b16 %v117
  %v466 = vunpack.c.h.b16 %v117
  %v467 = vunpack.c.l.b16 %v118
  %v468 = vunpack.c.l.b16 %v119
  %v469 = vunpack.c.h.b16 %v119
  %v470 = vunpack.c.l.b16 %v120
  %v471 = vunpack.c.l.b16 %v121
  %v472 = vunpack.c.h.b16 %v121
  %v473 = vunpack.c.l.b16 %v122
  %v474 = vunpack.c.l.b16 %v123
  %v475 = vunpack.c.h.b16 %v123
  %v476 = vunpack.c.l.b16 %v124
  %v477 = vunpack.c.l.b16 %v125
  %v478 = vunpack.c.h.b16 %v125
  %v479 = vunpack.c.l.b16 %v126
  %v480 = vunpack.c.l.b16 %v127
  %v481 = vunpack.c.h.b16 %v127
  %v482 = vunpack.c.l.b16 %v128
  %v483 = vunpack.c.l.b16 %v129
  %v484 = vunpack.c.h.b16 %v129
  %v485 = vunpack.c.l.b16 %v130
  %v486 = vunpack.c.l.b16 %v131
  %v487 = vunpack.c.h.b16 %v131
  %v488 = vunpack.c.l.b16 %v132
  %v489 = vunpack.c.l.b16 %v133
  %v490 = vunpack.c.h.b16 %v133
  %v491 = vunpack.c.l.b16 %v134
  %v492 = vunpack.c.l.b16 %v135
  %v493 = vunpack.c.h.b16 %v135
  %v494 = vunpack.c.l.b16 %v136
  %v495 = vunpack.c.l.b16 %v137
  %v496 = vunpack.c.h.b16 %v137
  %v497 = vunpack.c.l.b16 %v138
  %v498 = vunpack.c.l.b16 %v139
  %v499 = vunpack.c.h.b16 %v139
  %v500 = vunpack.c.l.b16 %v140
  %v501 = vunpack.c.l.b16 %v141
  %v502 = vunpack.c.h.b16 %v141
  %v503 = vunpack.c.l.b16 %v142
  %v504 = vunpack.c.l.b16 %v143
  %v505 = vunpack.c.h.b16 %v143
  %v506 = vunpack.c.l.b16 %v144
  %v507 = vunpack.c.l.b16 %v145
  %v508 = vunpack.c.h.b16 %v145
  %v509 = vunpack.c.l.b16 %v146
  %v510 = vunpack.c.l.b16 %v147
  %v511 = vunpack.c.h.b16 %v147
  %v512 = vunpack.c.l.b16 %v148
  %v513 = vunpack.c.l.b16 %v149
  %v514 = vunpack.c.h.b16 %v149
  %v515 = vunpack.c.l.b16 %v150
  %v516 = vunpack.c.l.b16 %v151
  %v517 = vunpack.c.h.b16 %v151
  %v518 = vunpack.c.l.b16 %v152
  %v519 = vunpack.c.l.b16 %v153
  %v520 = vunpack.c.h.b16 %v153
  %v521 = vunpack.c.l.b16 %v154
  %v522 = vunpack.c.l.b16 %v155
  %v523 = vunpack.c.h.b16 %v155
  %v524 = vunpack.c.l.b16 %v156
  %v525 = vunpack.c.l.b16 %v157
  %v526 = vunpack.c.h.b16 %v157
  %v527 = vunpack.c.l.b16 %v158
  %v528 = vunpack.c.l.b16 %v159
  %v529 = vunpack.c.h.b16 %v159
  %v530 = vunpack.c.l.b16 %v160
  %v531 = vunpack.c.l.b16 %v161
  %v532 = vunpack.c.h.b16 %v161
  %v533 = vunpack.c.l.b16 %v162
  %v534 = vunpack.c.l.b16 %v163
  %v535 = vunpack.c.h.b16 %v163
  %v536 = vunpack.c.l.b16 %v164
  %v537 = vunpack.c.l.b16 %v165
  %v538 = vunpack.c.h.b16 %v165
  %v539 = vunpack.c.l.b16 %v166
  %v540 = vunpack.c.l.b16 %v167
  %v541 = vunpack.c.h.b16 %v167
  %v542 = vunpack.c.l.b16 %v168
  %v543 = vpack.c.b16 %v354, %v351
  %v544 = vpack.c.b16 %v355, %v352
  %v545 = vpack.c.b16 %v356, %v353
  %v546 = vpack.c.b16 %v360, %v357
  %v547 = vpack.c.b16 %v361, %v358
  %v548 = vpack.c.b16 %v362, %v359
  %v549 = vpack.c.b16 %v366, %v363
  %v550 = vpack.c.b16 %v367, %v364
  %v551 = vpack.c.b16 %v368, %v365
  %v552 = vpack.c.b16 %v372, %v369
  %v553 = vpack.c.b16 %v373, %v370
  %v554 = vpack.c.b16 %v374, %v371
  %v555 = vpack.c.b16 %v378, %v375
  %v556 = vpack.c.b16 %v379, %v376
  %v557 = vpack.c.b16 %v380, %v377
  %v558 = vpack.c.b16 %v384, %v381
  %v559 = vpack.c.b16 %v385, %v382
  %v560 = vpack.c.b16 %v386, %v383
  %v561 = vpack.c.b16 %v390, %v387
  %v562 = vpack.c.b16 %v391, %v388
  %v563 = vpack.c.b16 %v392, %v389
  %v564 = vpack.c.b16 %v396, %v393
  %v565 = vpack.c.b16 %v397, %v394
  %v566 = vpack.c.b16 %v398, %v395
  %v567 = vpack.c.b16 %v402, %v399
  %v568 = vpack.c.b16 %v403, %v400
  %v569 = vpack.c.b16 %v404, %v401
  %v570 = vpack.c.b16 %v408, %v405
  %v571 = vpack.c.b16 %v409, %v406
  %v572 = vpack.c.b16 %v410, %v407
  %v573 = vpack.c.b16 %v414, %v411
  %v574 = vpack.c.b16 %v415, %v412
  %v575 = vpack.c.b16 %v416, %v413
  %v576 = vpack.c.b16 %v420, %v417
  %v577 = vpack.c.b16 %v421, %v418
  %v578 = vpack.c.b16 %v422, %v419
  %v579 = vpack.c.b16 %v426, %v423
  %v580 = vpack.c.b16 %v427, %v424
  %v581 = vpack.c.b16 %v428, %v425
  %v582 = vpack.c.b16 %v432, %v429
  %v583 = vpack.c.b16 %v433, %v430
  %v584 = vpack.c.b16 %v434, %v431
  %v585 = vpack.c.b16 %v438, %v435
  %v586 = vpack.c.b16 %v439, %v436
  %v587 = vpack.c.b16 %v440, %v437
  %v588 = vpack.c.b16 %v444, %v441
  %v589 = vpack.c.b16 %v445, %v442
  %v590 = vpack.c.b16 %v446, %v443
  %v591 = vpack.c.b16 %v450, %v447
  %v592 = vpack.c.b16 %v451, %v448
  %v593 = vpack.c.b16 %v452, %v449
  %v594 = vpack.c.b16 %v456, %v453
  %v595 = vpack.c.b16 %v457, %v454
  %v596 = vpack.c.b16 %v458, %v455
  %v597 = vpack.c.b16 %v462, %v459
  %v598 = vpack.c.b16 %v463, %v460
  %v599 = vpack.c.b16 %v464, %v461
  %v600 = vpack.c.b16 %v468, %v465
  %v601 = vpack.c.b16 %v469, %v466
  %v602 = vpack.c.b16 %v470, %v467
  %v603 = vpack.c.b16 %v474, %v471
  %v604 = vpack.c.b16 %v475, %v472
  %v605 = vpack.c.b16 %v476, %v473
  %v606 = vpack.c.b16 %v480, %v477
  %v607 = vpack.c.b16 %v481, %v478
  %v608 = vpack.c.b16 %v482, %v479
  %v609 = vpack.c.b16 %v486, %v483
  %v610 = vpack.c.b16 %v487, %v484
  %v611 = vpack.c.b16 %v488, %v485
  %v612 = vpack.c.b16 %v492, %v489
  %v613 = vpack.c.b16 %v493, %v490
  %v614 = vpack.c.b16 %v494, %v491
  %v615 = vpack.c.b16 %v498, %v495
  %v616 = vpack.c.b16 %v499, %v496
  %v617 = vpack.c.b16 %v500, %v497
  %v618 = vpack.c.b16 %v504, %v501
  %v619 = vpack.c.b16 %v505, %v502
  %v620 = vpack.c.b16 %v506, %v503
  %v621 = vpack.c.b16 %v510, %v507
  %v622 = vpack.c.b16 %v511, %v508
  %v623 = vpack.c.b16 %v512, %v509
  %v624 = vpack.c.b16 %v516, %v513
  %v625 = vpack.c.b16 %v517, %v514
  %v626 = vpack.c.b16 %v518, %v515
  %v627 = vpack.c.b16 %v522, %v519
  %v628 = vpack.c.b16 %v523, %v520
  %v629 = vpack.c.b16 %v524, %v521
  %v630 = vpack.c.b16 %v528, %v525
  %v631 = vpack.c.b16 %v529, %v526
  %v632 = vpack.c.b16 %v530, %v527
  %v633 = vpack.c.b16 %v534, %v531
  %v634 = vpack.c.b16 %v535, %v532
  %v635 = vpack.c.b16 %v536, %v533
  %v636 = vpack.c.b16 %v540, %v537
  %v637 = vpack.c.b16 %v541, %v538
  %v638 = vpack.c.b16 %v542, %v539
  %735 = vmatprep.subr.bf16.mxu0 %v565
  %736 = vmatpush1.bf16.msra.mxu0 %v564
  %737 = vmatprep.subr.bf16.mxu0 %v562
  %738 = vmatpush1.bf16.msra.mxu0 %v561
  %739 = vmatprep.subr.bf16.mxu0 %v559
  %740 = vmatpush1.bf16.msra.mxu0 %v558
  %741 = vmatprep.subr.bf16.mxu0 %v556
  %742 = vmatpush1.bf16.msra.mxu0 %v555
  %743 = vmatprep.subr.bf16.mxu0 %v553
  %744 = vmatpush1.bf16.msra.mxu0 %v552
  %745 = vmatprep.subr.bf16.mxu0 %v550
  %746 = vmatpush1.bf16.msra.mxu0 %v549
  %747 = vmatprep.subr.bf16.mxu0 %v547
  %748 = vmatpush1.bf16.msra.mxu0 %v546
  %749 = vmatprep.subr.bf16.mxu0 %v544
  %750 = vmatpush1.bf16.msra.mxu0 %v543
  %751 = vmatprep.subr.bf16.mxu0 %v589
  %752 = vmatpush2.bf16.msra.mxu0 %v588
  %753 = vmatprep.subr.bf16.mxu0 %v586
  %754 = vmatpush2.bf16.msra.mxu0 %v585
  %755 = vmatprep.subr.bf16.mxu0 %v583
  %756 = vmatpush2.bf16.msra.mxu0 %v582
  %757 = vmatprep.subr.bf16.mxu0 %v580
  %758 = vmatpush2.bf16.msra.mxu0 %v579
  %759 = vmatprep.subr.bf16.mxu0 %v577
  %760 = vmatpush2.bf16.msra.mxu0 %v576
  %761 = vmatprep.subr.bf16.mxu0 %v574
  %762 = vmatpush2.bf16.msra.mxu0 %v573
  %763 = vmatprep.subr.bf16.mxu0 %v571
  %764 = vmatpush2.bf16.msra.mxu0 %v570
  %765 = vmatprep.subr.bf16.mxu0 %v568
  %766 = vmatpush2.bf16.msra.mxu0 %v567
  %767 = vmatprep.mubr.bf16.mxu0 %v200
  %768 = vmatmul.mubr.bf16.gmra.mxu0 %v199
  %v769 = vpop.f32.mrf.mxu0
  %v770 = vadd.f32 0.0, %v769
  %v771 = vpop.f32.mrf.mxu0
  %v772 = vadd.f32 0.0, %v771
  %v773 = vpop.f32.mrf.mxu0
  %v774 = vadd.f32 0.0, %v773
  %v775 = vpop.f32.mrf.mxu0
  %v776 = vadd.f32 0.0, %v775
  %777 = vmatprep.mubr.bf16.mxu0 %v204
  %778 = vmatmul.mubr.bf16.gmra.mxu0 %v203
  %v779 = vpop.f32.mrf.mxu0
  %v780 = vadd.f32 0.0, %v779
  %v781 = vpop.f32.mrf.mxu0
  %v782 = vadd.f32 0.0, %v781
  %v783 = vpop.f32.mrf.mxu0
  %v784 = vadd.f32 0.0, %v783
  %v785 = vpop.f32.mrf.mxu0
  %v786 = vadd.f32 0.0, %v785
  %787 = vmatprep.mubr.bf16.mxu0 %v208
  %788 = vmatmul.mubr.bf16.gmra.mxu0 %v207
  %v789 = vpop.f32.mrf.mxu0
  %v790 = vadd.f32 0.0, %v789
  %v791 = vpop.f32.mrf.mxu0
  %v792 = vadd.f32 0.0, %v791
  %v793 = vpop.f32.mrf.mxu0
  %v794 = vpop.f32.mrf.mxu0
  %795 = vdwg.mxu0
  %796 = vmatprep.subr.bf16.mxu0 %v613
  %797 = vmatpush1.bf16.msra.mxu0 %v612
  %798 = vmatprep.subr.bf16.mxu0 %v610
  %799 = vmatpush1.bf16.msra.mxu0 %v609
  %800 = vmatprep.subr.bf16.mxu0 %v607
  %801 = vmatpush1.bf16.msra.mxu0 %v606
  %802 = vmatprep.subr.bf16.mxu0 %v604
  %803 = vmatpush1.bf16.msra.mxu0 %v603
  %804 = vmatprep.subr.bf16.mxu0 %v601
  %805 = vmatpush1.bf16.msra.mxu0 %v600
  %806 = vmatprep.subr.bf16.mxu0 %v598
  %807 = vmatpush1.bf16.msra.mxu0 %v597
  %808 = vmatprep.subr.bf16.mxu0 %v595
  %809 = vmatpush1.bf16.msra.mxu0 %v594
  %810 = vmatprep.subr.bf16.mxu0 %v592
  %811 = vmatpush1.bf16.msra.mxu0 %v591
  %812 = vmatprep.subr.bf16.mxu0 %v637
  %813 = vmatpush2.bf16.msra.mxu0 %v636
  %814 = vmatprep.subr.bf16.mxu0 %v634
  %815 = vmatpush2.bf16.msra.mxu0 %v633
  %816 = vmatprep.subr.bf16.mxu0 %v631
  %817 = vmatpush2.bf16.msra.mxu0 %v630
  %818 = vmatprep.subr.bf16.mxu0 %v628
  %819 = vmatpush2.bf16.msra.mxu0 %v627
  %820 = vmatprep.subr.bf16.mxu0 %v625
  %821 = vmatpush2.bf16.msra.mxu0 %v624
  %822 = vmatprep.subr.bf16.mxu0 %v622
  %823 = vmatpush2.bf16.msra.mxu0 %v621
  %824 = vmatprep.subr.bf16.mxu0 %v619
  %825 = vmatpush2.bf16.msra.mxu0 %v618
  %826 = vmatprep.subr.bf16.mxu0 %v616
  %827 = vmatpush2.bf16.msra.mxu0 %v615
  %828 = vmatprep.mubr.bf16.mxu0 %v202
  %829 = vmatmul.mubr.bf16.gmra.mxu0 %v201
  %v830 = vpop.f32.mrf.mxu0
  %v831 = vadd.f32 %v770, %v830
  %v832 = vpop.f32.mrf.mxu0
  %v833 = vadd.f32 %v772, %v832
  %v834 = vpop.f32.mrf.mxu0
  %v835 = vadd.f32 %v774, %v834
  %v836 = vpop.f32.mrf.mxu0
  %v837 = vadd.f32 %v776, %v836
  %838 = vmatprep.mubr.bf16.mxu0 %v206
  %839 = vmatmul.mubr.bf16.gmra.mxu0 %v205
  %v840 = vpop.f32.mrf.mxu0
  %v841 = vadd.f32 %v780, %v840
  %v842 = vpop.f32.mrf.mxu0
  %v843 = vadd.f32 %v782, %v842
  %v844 = vpop.f32.mrf.mxu0
  %v845 = vadd.f32 %v784, %v844
  %v846 = vpop.f32.mrf.mxu0
  %v847 = vadd.f32 %v786, %v846
  %848 = vmatprep.mubr.bf16.mxu0 %v210
  %849 = vmatmul.mubr.bf16.gmra.mxu0 %v209
  %v850 = vpop.f32.mrf.mxu0
  %v851 = vadd.f32 %v790, %v850
  %v852 = vpop.f32.mrf.mxu0
  %v853 = vadd.f32 %v792, %v852
  %v854 = vpop.f32.mrf.mxu0
  %v855 = vpop.f32.mrf.mxu0
  %856 = vdwg.mxu0
  %857 = vmatprep.subr.bf16.mxu0 0
  %858 = vmatpush1.bf16.msra.mxu0 %v566
  %859 = vmatprep.subr.bf16.mxu0 0
  %860 = vmatpush1.bf16.msra.mxu0 %v563
  %861 = vmatprep.subr.bf16.mxu0 0
  %862 = vmatpush1.bf16.msra.mxu0 %v560
  %863 = vmatprep.subr.bf16.mxu0 0
  %864 = vmatpush1.bf16.msra.mxu0 %v557
  %865 = vmatprep.subr.bf16.mxu0 0
  %866 = vmatpush1.bf16.msra.mxu0 %v554
  %867 = vmatprep.subr.bf16.mxu0 0
  %868 = vmatpush1.bf16.msra.mxu0 %v551
  %869 = vmatprep.subr.bf16.mxu0 0
  %870 = vmatpush1.bf16.msra.mxu0 %v548
  %871 = vmatprep.subr.bf16.mxu0 0
  %872 = vmatpush1.bf16.msra.mxu0 %v545
  %873 = vmatprep.subr.bf16.mxu0 0
  %874 = vmatpush2.bf16.msra.mxu0 %v590
  %875 = vmatprep.subr.bf16.mxu0 0
  %876 = vmatpush2.bf16.msra.mxu0 %v587
  %877 = vmatprep.subr.bf16.mxu0 0
  %878 = vmatpush2.bf16.msra.mxu0 %v584
  %879 = vmatprep.subr.bf16.mxu0 0
  %880 = vmatpush2.bf16.msra.mxu0 %v581
  %881 = vmatprep.subr.bf16.mxu0 0
  %882 = vmatpush2.bf16.msra.mxu0 %v578
  %883 = vmatprep.subr.bf16.mxu0 0
  %884 = vmatpush2.bf16.msra.mxu0 %v575
  %885 = vmatprep.subr.bf16.mxu0 0
  %886 = vmatpush2.bf16.msra.mxu0 %v572
  %887 = vmatprep.subr.bf16.mxu0 0
  %888 = vmatpush2.bf16.msra.mxu0 %v569
  %889 = vmatprep.mubr.bf16.mxu0 %v200
  %890 = vmatmul.mubr.bf16.gmra.mxu0 %v199
  %v891 = vpop.f32.mrf.mxu0
  %v892 = vadd.f32 0.0, %v891
  %v893 = vpop.f32.mrf.mxu0
  %v894 = vpop.f32.mrf.mxu0
  %v895 = vadd.f32 0.0, %v894
  %v896 = vpop.f32.mrf.mxu0
  %897 = vmatprep.mubr.bf16.mxu0 %v204
  %898 = vmatmul.mubr.bf16.gmra.mxu0 %v203
  %v899 = vpop.f32.mrf.mxu0
  %v900 = vadd.f32 0.0, %v899
  %v901 = vpop.f32.mrf.mxu0
  %v902 = vpop.f32.mrf.mxu0
  %v903 = vadd.f32 0.0, %v902
  %v904 = vpop.f32.mrf.mxu0
  %905 = vmatprep.mubr.bf16.mxu0 %v208
  %906 = vmatmul.mubr.bf16.gmra.mxu0 %v207
  %v907 = vpop.f32.mrf.mxu0
  %v908 = vadd.f32 0.0, %v907
  %v909 = vpop.f32.mrf.mxu0
  %v910 = vpop.f32.mrf.mxu0
  %v911 = vpop.f32.mrf.mxu0
  %912 = vdwg.mxu0
  %913 = vmatprep.subr.bf16.mxu0 0
  %914 = vmatpush1.bf16.msra.mxu0 %v614
  %915 = vmatprep.subr.bf16.mxu0 0
  %916 = vmatpush1.bf16.msra.mxu0 %v611
  %917 = vmatprep.subr.bf16.mxu0 0
  %918 = vmatpush1.bf16.msra.mxu0 %v608
  %919 = vmatprep.subr.bf16.mxu0 0
  %920 = vmatpush1.bf16.msra.mxu0 %v605
  %921 = vmatprep.subr.bf16.mxu0 0
  %922 = vmatpush1.bf16.msra.mxu0 %v602
  %923 = vmatprep.subr.bf16.mxu0 0
  %924 = vmatpush1.bf16.msra.mxu0 %v599
  %925 = vmatprep.subr.bf16.mxu0 0
  %926 = vmatpush1.bf16.msra.mxu0 %v596
  %927 = vmatprep.subr.bf16.mxu0 0
  %928 = vmatpush1.bf16.msra.mxu0 %v593
  %929 = vmatprep.subr.bf16.mxu0 0
  %930 = vmatpush2.bf16.msra.mxu0 %v638
  %931 = vmatprep.subr.bf16.mxu0 0
  %932 = vmatpush2.bf16.msra.mxu0 %v635
  %933 = vmatprep.subr.bf16.mxu0 0
  %934 = vmatpush2.bf16.msra.mxu0 %v632
  %935 = vmatprep.subr.bf16.mxu0 0
  %936 = vmatpush2.bf16.msra.mxu0 %v629
  %937 = vmatprep.subr.bf16.mxu0 0
  %938 = vmatpush2.bf16.msra.mxu0 %v626
  %939 = vmatprep.subr.bf16.mxu0 0
  %940 = vmatpush2.bf16.msra.mxu0 %v623
  %941 = vmatprep.subr.bf16.mxu0 0
  %942 = vmatpush2.bf16.msra.mxu0 %v620
  %943 = vmatprep.subr.bf16.mxu0 0
  %944 = vmatpush2.bf16.msra.mxu0 %v617
  %945 = vmatprep.mubr.bf16.mxu0 %v202
  %946 = vmatmul.mubr.bf16.gmra.mxu0 %v201
  %v947 = vpop.f32.mrf.mxu0
  %v948 = vadd.f32 %v892, %v947
  %v949 = vpop.f32.mrf.mxu0
  %v950 = vpop.f32.mrf.mxu0
  %v951 = vadd.f32 %v895, %v950
  %v952 = vpop.f32.mrf.mxu0
  %953 = vmatprep.mubr.bf16.mxu0 %v206
  %954 = vmatmul.mubr.bf16.gmra.mxu0 %v205
  %v955 = vpop.f32.mrf.mxu0
  %v956 = vadd.f32 %v900, %v955
  %v957 = vpop.f32.mrf.mxu0
  %v958 = vpop.f32.mrf.mxu0
  %v959 = vadd.f32 %v903, %v958
  %v960 = vpop.f32.mrf.mxu0
  %961 = vmatprep.mubr.bf16.mxu0 %v210
  %962 = vmatmul.mubr.bf16.gmra.mxu0 %v209
  %v963 = vpop.f32.mrf.mxu0
  %v964 = vadd.f32 %v908, %v963
  %v965 = vpop.f32.mrf.mxu0
  %v966 = vpop.f32.mrf.mxu0
  %v967 = vpop.f32.mrf.mxu0
  %968 = vdwg.mxu0
  %v969 = vld [vmem:[%s2] sm:$0xff]
  %v970 = vld [vmem:[%s2 + $0x8] sm:$0xf]
  %v971 = vld [vmem:[%s2 + $0xc] sm:$0xff]
  %v972 = vld [vmem:[%s2 + $0x14] sm:$0xf]
  %v973 = vld [vmem:[%s2 + $0x18] sm:$0xff]
  %v974 = vld [vmem:[%s2 + $0x20] sm:$0xf]
  %v975 = vld [vmem:[%s2 + $0x24] sm:$0xff]
  %v976 = vld [vmem:[%s2 + $0x2c] sm:$0xf]
  %v977 = vld [vmem:[%s2 + $0x30] sm:$0xff]
  %v978 = vld [vmem:[%s2 + $0x38] sm:$0xf]
  %v979 = vld [vmem:[%s2 + $0x3c] sm:$0xff]
  %v980 = vld [vmem:[%s2 + $0x44] sm:$0xf]
  %v981 = vld [vmem:[%s2 + $0x48] sm:$0xff]
  %v982 = vld [vmem:[%s2 + $0x50] sm:$0xf]
  %v983 = vld [vmem:[%s2 + $0x54] sm:$0xff]
  %v984 = vld [vmem:[%s2 + $0x5c] sm:$0xf]
  %v985 = vld [vmem:[%s2 + $0x60] sm:$0xff]
  %v986 = vld [vmem:[%s2 + $0x68] sm:$0xf]
  %v987 = vld [vmem:[%s2 + $0x6c] sm:$0xff]
  %v988 = vld [vmem:[%s2 + $0x74] sm:$0xf]
  %v989 = vld [vmem:[%s2 + $0x78] sm:$0xff]
  %v990 = vld [vmem:[%s2 + $0x80] sm:$0xf]
  %v991 = vld [vmem:[%s2 + $0x84] sm:$0xff]
  %v992 = vld [vmem:[%s2 + $0x8c] sm:$0xf]
  %v993 = vld [vmem:[%s2 + $0x90] sm:$0xff]
  %v994 = vld [vmem:[%s2 + $0x98] sm:$0xf]
  %v995 = vld [vmem:[%s2 + $0x9c] sm:$0xff]
  %v996 = vld [vmem:[%s2 + $0xa4] sm:$0xf]
  %v997 = vld [vmem:[%s2 + $0xa8] sm:$0xff]
  %v998 = vld [vmem:[%s2 + $0xb0] sm:$0xf]
  %v999 = vld [vmem:[%s2 + $0xb4] sm:$0xff]
  %v1000 = vld [vmem:[%s2 + $0xbc] sm:$0xf]
  %v1001 = vld [vmem:[%s2 + $0xc0] sm:$0xff]
  %v1002 = vld [vmem:[%s2 + $0xc8] sm:$0xf]
  %v1003 = vld [vmem:[%s2 + $0xcc] sm:$0xff]
  %v1004 = vld [vmem:[%s2 + $0xd4] sm:$0xf]
  %v1005 = vld [vmem:[%s2 + $0xd8] sm:$0xff]
  %v1006 = vld [vmem:[%s2 + $0xe0] sm:$0xf]
  %v1007 = vld [vmem:[%s2 + $0xe4] sm:$0xff]
  %v1008 = vld [vmem:[%s2 + $0xec] sm:$0xf]
  %v1009 = vld [vmem:[%s2 + $0xf0] sm:$0xff]
  %v1010 = vld [vmem:[%s2 + $0xf8] sm:$0xf]
  %v1011 = vld [vmem:[%s2 + $0xfc] sm:$0xff]
  %v1012 = vld [vmem:[%s2 + $0x104] sm:$0xf]
  %v1013 = vld [vmem:[%s2 + $0x108] sm:$0xff]
  %v1014 = vld [vmem:[%s2 + $0x110] sm:$0xf]
  %v1015 = vld [vmem:[%s2 + $0x114] sm:$0xff]
  %v1016 = vld [vmem:[%s2 + $0x11c] sm:$0xf]
  %v1017 = vld [vmem:[%s2 + $0x120] sm:$0xff]
  %v1018 = vld [vmem:[%s2 + $0x128] sm:$0xf]
  %v1019 = vld [vmem:[%s2 + $0x12c] sm:$0xff]
  %v1020 = vld [vmem:[%s2 + $0x134] sm:$0xf]
  %v1021 = vld [vmem:[%s2 + $0x138] sm:$0xff]
  %v1022 = vld [vmem:[%s2 + $0x140] sm:$0xf]
  %v1023 = vld [vmem:[%s2 + $0x144] sm:$0xff]
  %v1024 = vld [vmem:[%s2 + $0x14c] sm:$0xf]
  %v1025 = vld [vmem:[%s2 + $0x150] sm:$0xff]
  %v1026 = vld [vmem:[%s2 + $0x158] sm:$0xf]
  %v1027 = vld [vmem:[%s2 + $0x15c] sm:$0xff]
  %v1028 = vld [vmem:[%s2 + $0x164] sm:$0xf]
  %v1029 = vld [vmem:[%s2 + $0x168] sm:$0xff]
  %v1030 = vld [vmem:[%s2 + $0x170] sm:$0xf]
  %v1031 = vld [vmem:[%s2 + $0x174] sm:$0xff]
  %v1032 = vld [vmem:[%s2 + $0x17c] sm:$0xf]
  %v1033 = vld [vmem:[%s2 + $0x180] sm:$0xff]
  %v1034 = vld [vmem:[%s2 + $0x188] sm:$0xf]
  %v1035 = vld [vmem:[%s2 + $0x18c] sm:$0xff]
  %v1036 = vld [vmem:[%s2 + $0x194] sm:$0xf]
  %v1037 = vld [vmem:[%s2 + $0x198] sm:$0xff]
  %v1038 = vld [vmem:[%s2 + $0x1a0] sm:$0xf]
  %v1039 = vld [vmem:[%s2 + $0x1a4] sm:$0xff]
  %v1040 = vld [vmem:[%s2 + $0x1ac] sm:$0xf]
  %v1041 = vld [vmem:[%s2 + $0x1b0] sm:$0xff]
  %v1042 = vld [vmem:[%s2 + $0x1b8] sm:$0xf]
  %v1043 = vld [vmem:[%s2 + $0x1bc] sm:$0xff]
  %v1044 = vld [vmem:[%s2 + $0x1c4] sm:$0xf]
  %v1045 = vld [vmem:[%s2 + $0x1c8] sm:$0xff]
  %v1046 = vld [vmem:[%s2 + $0x1d0] sm:$0xf]
  %v1047 = vld [vmem:[%s2 + $0x1d4] sm:$0xff]
  %v1048 = vld [vmem:[%s2 + $0x1dc] sm:$0xf]
  %v1049 = vld [vmem:[%s2 + $0x1e0] sm:$0xff]
  %v1050 = vld [vmem:[%s2 + $0x1e8] sm:$0xf]
  %v1051 = vld [vmem:[%s2 + $0x1ec] sm:$0xff]
  %v1052 = vld [vmem:[%s2 + $0x1f4] sm:$0xf]
  %v1053 = vld [vmem:[%s2 + $0x1f8] sm:$0xff]
  %v1054 = vld [vmem:[%s2 + $0x200] sm:$0xf]
  %v1055 = vld [vmem:[%s2 + $0x204] sm:$0xff]
  %v1056 = vld [vmem:[%s2 + $0x20c] sm:$0xf]
  %v1057 = vld [vmem:[%s2 + $0x210] sm:$0xff]
  %v1058 = vld [vmem:[%s2 + $0x218] sm:$0xf]
  %v1059 = vld [vmem:[%s2 + $0x21c] sm:$0xff]
  %v1060 = vld [vmem:[%s2 + $0x224] sm:$0xf]
  %v1061 = vld [vmem:[%s2 + $0x228] sm:$0xff]
  %v1062 = vld [vmem:[%s2 + $0x230] sm:$0xf]
  %v1063 = vld [vmem:[%s2 + $0x234] sm:$0xff]
  %v1064 = vld [vmem:[%s2 + $0x23c] sm:$0xf]
  %v1065 = vld [vmem:[%s2 + $0x240] sm:$0xff]
  %v1066 = vld [vmem:[%s2 + $0x248] sm:$0xf]
  %v1067 = vld [vmem:[%s2 + $0x24c] sm:$0xff]
  %v1068 = vld [vmem:[%s2 + $0x254] sm:$0xf]
  %v1069 = vld [vmem:[%s2 + $0x258] sm:$0xff]
  %v1070 = vld [vmem:[%s2 + $0x260] sm:$0xf]
  %v1071 = vld [vmem:[%s2 + $0x264] sm:$0xff]
  %v1072 = vld [vmem:[%s2 + $0x26c] sm:$0xf]
  %v1073 = vld [vmem:[%s2 + $0x270] sm:$0xff]
  %v1074 = vld [vmem:[%s2 + $0x278] sm:$0xf]
  %v1075 = vld [vmem:[%s2 + $0x27c] sm:$0xff]
  %v1076 = vld [vmem:[%s2 + $0x284] sm:$0xf]
  %v1077 = vld [vmem:[%s2 + $0x288] sm:$0xff]
  %v1078 = vld [vmem:[%s2 + $0x290] sm:$0xf]
  %v1079 = vld [vmem:[%s2 + $0x294] sm:$0xff]
  %v1080 = vld [vmem:[%s2 + $0x29c] sm:$0xf]
  %v1081 = vld [vmem:[%s2 + $0x2a0] sm:$0xff]
  %v1082 = vld [vmem:[%s2 + $0x2a8] sm:$0xf]
  %v1083 = vld [vmem:[%s2 + $0x2ac] sm:$0xff]
  %v1084 = vld [vmem:[%s2 + $0x2b4] sm:$0xf]
  %v1085 = vld [vmem:[%s2 + $0x2b8] sm:$0xff]
  %v1086 = vld [vmem:[%s2 + $0x2c0] sm:$0xf]
  %v1087 = vld [vmem:[%s2 + $0x2c4] sm:$0xff]
  %v1088 = vld [vmem:[%s2 + $0x2cc] sm:$0xf]
  %v1089 = vld [vmem:[%s2 + $0x2d0] sm:$0xff]
  %v1090 = vld [vmem:[%s2 + $0x2d8] sm:$0xf]
  %v1091 = vld [vmem:[%s2 + $0x2dc] sm:$0xff]
  %v1092 = vld [vmem:[%s2 + $0x2e4] sm:$0xf]
  %v1093 = vld [vmem:[%s2 + $0x2e8] sm:$0xff]
  %v1094 = vld [vmem:[%s2 + $0x2f0] sm:$0xf]
  %v1095 = vld [vmem:[%s2 + $0x2f4] sm:$0xff]
  %v1096 = vld [vmem:[%s2 + $0x2fc] sm:$0xf]
  %v1107 = vunpack.c.l.b16 %v31
  %v1108 = vunpack.c.h.b16 %v31
  %v1109 = vunpack.c.l.b16 %v32
  %v1110 = vunpack.c.h.b16 %v32
  %v1111 = vunpack.c.l.b16 %v33
  %v1112 = vunpack.c.h.b16 %v33
  %v1113 = vunpack.c.l.b16 %v34
  %v1114 = vunpack.c.h.b16 %v34
  %v1115 = vunpack.c.l.b16 %v35
  %v1116 = vunpack.c.h.b16 %v35
  %v1117 = vunpack.c.l.b16 %v36
  %v1118 = vunpack.c.h.b16 %v36
  %v1119 = vunpack.c.l.b16 %v37
  %v1120 = vunpack.c.h.b16 %v37
  %v1121 = vunpack.c.l.b16 %v38
  %v1122 = vunpack.c.h.b16 %v38
  %v1123 = vunpack.c.l.b16 %v39
  %v1124 = vunpack.c.h.b16 %v39
  %v1125 = vunpack.c.l.b16 %v40
  %v1126 = vunpack.c.h.b16 %v40
  %v1127 = vpack.c.b16 %v1111, %v1107
  %v1128 = vpack.c.b16 %v1112, %v1108
  %v1129 = vpack.c.b16 %v1113, %v1109
  %v1130 = vpack.c.b16 %v1114, %v1110
  %v1131 = vpack.c.b16 %v1119, %v1115
  %v1132 = vpack.c.b16 %v1120, %v1116
  %v1133 = vpack.c.b16 %v1121, %v1117
  %v1134 = vpack.c.b16 %v1122, %v1118
  %v1135 = vpack.c.b16 %v1123, %v1123
  %v1136 = vpack.c.b16 %v1124, %v1124
  %v1137 = vpack.c.b16 %v1125, %v1125
  %v1138 = vpack.c.b16 %v1126, %v1126
  %v1279 = vunpack.c.l.b16 %v969
  %v1280 = vunpack.c.h.b16 %v969
  %v1281 = vunpack.c.l.b16 %v970
  %v1282 = vunpack.c.l.b16 %v971
  %v1283 = vunpack.c.h.b16 %v971
  %v1284 = vunpack.c.l.b16 %v972
  %v1285 = vunpack.c.l.b16 %v973
  %v1286 = vunpack.c.h.b16 %v973
  %v1287 = vunpack.c.l.b16 %v974
  %v1288 = vunpack.c.l.b16 %v975
  %v1289 = vunpack.c.h.b16 %v975
  %v1290 = vunpack.c.l.b16 %v976
  %v1291 = vunpack.c.l.b16 %v977
  %v1292 = vunpack.c.h.b16 %v977
  %v1293 = vunpack.c.l.b16 %v978
  %v1294 = vunpack.c.l.b16 %v979
  %v1295 = vunpack.c.h.b16 %v979
  %v1296 = vunpack.c.l.b16 %v980
  %v1297 = vunpack.c.l.b16 %v981
  %v1298 = vunpack.c.h.b16 %v981
  %v1299 = vunpack.c.l.b16 %v982
  %v1300 = vunpack.c.l.b16 %v983
  %v1301 = vunpack.c.h.b16 %v983
  %v1302 = vunpack.c.l.b16 %v984
  %v1303 = vunpack.c.l.b16 %v985
  %v1304 = vunpack.c.h.b16 %v985
  %v1305 = vunpack.c.l.b16 %v986
  %v1306 = vunpack.c.l.b16 %v987
  %v1307 = vunpack.c.h.b16 %v987
  %v1308 = vunpack.c.l.b16 %v988
  %v1309 = vunpack.c.l.b16 %v989
  %v1310 = vunpack.c.h.b16 %v989
  %v1311 = vunpack.c.l.b16 %v990
  %v1312 = vunpack.c.l.b16 %v991
  %v1313 = vunpack.c.h.b16 %v991
  %v1314 = vunpack.c.l.b16 %v992
  %v1315 = vunpack.c.l.b16 %v993
  %v1316 = vunpack.c.h.b16 %v993
  %v1317 = vunpack.c.l.b16 %v994
  %v1318 = vunpack.c.l.b16 %v995
  %v1319 = vunpack.c.h.b16 %v995
  %v1320 = vunpack.c.l.b16 %v996
  %v1321 = vunpack.c.l.b16 %v997
  %v1322 = vunpack.c.h.b16 %v997
  %v1323 = vunpack.c.l.b16 %v998
  %v1324 = vunpack.c.l.b16 %v999
  %v1325 = vunpack.c.h.b16 %v999
  %v1326 = vunpack.c.l.b16 %v1000
  %v1327 = vunpack.c.l.b16 %v1001
  %v1328 = vunpack.c.h.b16 %v1001
  %v1329 = vunpack.c.l.b16 %v1002
  %v1330 = vunpack.c.l.b16 %v1003
  %v1331 = vunpack.c.h.b16 %v1003
  %v1332 = vunpack.c.l.b16 %v1004
  %v1333 = vunpack.c.l.b16 %v1005
  %v1334 = vunpack.c.h.b16 %v1005
  %v1335 = vunpack.c.l.b16 %v1006
  %v1336 = vunpack.c.l.b16 %v1007
  %v1337 = vunpack.c.h.b16 %v1007
  %v1338 = vunpack.c.l.b16 %v1008
  %v1339 = vunpack.c.l.b16 %v1009
  %v1340 = vunpack.c.h.b16 %v1009
  %v1341 = vunpack.c.l.b16 %v1010
  %v1342 = vunpack.c.l.b16 %v1011
  %v1343 = vunpack.c.h.b16 %v1011
  %v1344 = vunpack.c.l.b16 %v1012
  %v1345 = vunpack.c.l.b16 %v1013
  %v1346 = vunpack.c.h.b16 %v1013
  %v1347 = vunpack.c.l.b16 %v1014
  %v1348 = vunpack.c.l.b16 %v1015
  %v1349 = vunpack.c.h.b16 %v1015
  %v1350 = vunpack.c.l.b16 %v1016
  %v1351 = vunpack.c.l.b16 %v1017
  %v1352 = vunpack.c.h.b16 %v1017
  %v1353 = vunpack.c.l.b16 %v1018
  %v1354 = vunpack.c.l.b16 %v1019
  %v1355 = vunpack.c.h.b16 %v1019
  %v1356 = vunpack.c.l.b16 %v1020
  %v1357 = vunpack.c.l.b16 %v1021
  %v1358 = vunpack.c.h.b16 %v1021
  %v1359 = vunpack.c.l.b16 %v1022
  %v1360 = vunpack.c.l.b16 %v1023
  %v1361 = vunpack.c.h.b16 %v1023
  %v1362 = vunpack.c.l.b16 %v1024
  %v1363 = vunpack.c.l.b16 %v1025
  %v1364 = vunpack.c.h.b16 %v1025
  %v1365 = vunpack.c.l.b16 %v1026
  %v1366 = vunpack.c.l.b16 %v1027
  %v1367 = vunpack.c.h.b16 %v1027
  %v1368 = vunpack.c.l.b16 %v1028
  %v1369 = vunpack.c.l.b16 %v1029
  %v1370 = vunpack.c.h.b16 %v1029
  %v1371 = vunpack.c.l.b16 %v1030
  %v1372 = vunpack.c.l.b16 %v1031
  %v1373 = vunpack.c.h.b16 %v1031
  %v1374 = vunpack.c.l.b16 %v1032
  %v1375 = vunpack.c.l.b16 %v1033
  %v1376 = vunpack.c.h.b16 %v1033
  %v1377 = vunpack.c.l.b16 %v1034
  %v1378 = vunpack.c.l.b16 %v1035
  %v1379 = vunpack.c.h.b16 %v1035
  %v1380 = vunpack.c.l.b16 %v1036
  %v1381 = vunpack.c.l.b16 %v1037
  %v1382 = vunpack.c.h.b16 %v1037
  %v1383 = vunpack.c.l.b16 %v1038
  %v1384 = vunpack.c.l.b16 %v1039
  %v1385 = vunpack.c.h.b16 %v1039
  %v1386 = vunpack.c.l.b16 %v1040
  %v1387 = vunpack.c.l.b16 %v1041
  %v1388 = vunpack.c.h.b16 %v1041
  %v1389 = vunpack.c.l.b16 %v1042
  %v1390 = vunpack.c.l.b16 %v1043
  %v1391 = vunpack.c.h.b16 %v1043
  %v1392 = vunpack.c.l.b16 %v1044
  %v1393 = vunpack.c.l.b16 %v1045
  %v1394 = vunpack.c.h.b16 %v1045
  %v1395 = vunpack.c.l.b16 %v1046
  %v1396 = vunpack.c.l.b16 %v1047
  %v1397 = vunpack.c.h.b16 %v1047
  %v1398 = vunpack.c.l.b16 %v1048
  %v1399 = vunpack.c.l.b16 %v1049
  %v1400 = vunpack.c.h.b16 %v1049
  %v1401 = vunpack.c.l.b16 %v1050
  %v1402 = vunpack.c.l.b16 %v1051
  %v1403 = vunpack.c.h.b16 %v1051
  %v1404 = vunpack.c.l.b16 %v1052
  %v1405 = vunpack.c.l.b16 %v1053
  %v1406 = vunpack.c.h.b16 %v1053
  %v1407 = vunpack.c.l.b16 %v1054
  %v1408 = vunpack.c.l.b16 %v1055
  %v1409 = vunpack.c.h.b16 %v1055
  %v1410 = vunpack.c.l.b16 %v1056
  %v1411 = vunpack.c.l.b16 %v1057
  %v1412 = vunpack.c.h.b16 %v1057
  %v1413 = vunpack.c.l.b16 %v1058
  %v1414 = vunpack.c.l.b16 %v1059
  %v1415 = vunpack.c.h.b16 %v1059
  %v1416 = vunpack.c.l.b16 %v1060
  %v1417 = vunpack.c.l.b16 %v1061
  %v1418 = vunpack.c.h.b16 %v1061
  %v1419 = vunpack.c.l.b16 %v1062
  %v1420 = vunpack.c.l.b16 %v1063
  %v1421 = vunpack.c.h.b16 %v1063
  %v1422 = vunpack.c.l.b16 %v1064
  %v1423 = vunpack.c.l.b16 %v1065
  %v1424 = vunpack.c.h.b16 %v1065
  %v1425 = vunpack.c.l.b16 %v1066
  %v1426 = vunpack.c.l.b16 %v1067
  %v1427 = vunpack.c.h.b16 %v1067
  %v1428 = vunpack.c.l.b16 %v1068
  %v1429 = vunpack.c.l.b16 %v1069
  %v1430 = vunpack.c.h.b16 %v1069
  %v1431 = vunpack.c.l.b16 %v1070
  %v1432 = vunpack.c.l.b16 %v1071
  %v1433 = vunpack.c.h.b16 %v1071
  %v1434 = vunpack.c.l.b16 %v1072
  %v1435 = vunpack.c.l.b16 %v1073
  %v1436 = vunpack.c.h.b16 %v1073
  %v1437 = vunpack.c.l.b16 %v1074
  %v1438 = vunpack.c.l.b16 %v1075
  %v1439 = vunpack.c.h.b16 %v1075
  %v1440 = vunpack.c.l.b16 %v1076
  %v1441 = vunpack.c.l.b16 %v1077
  %v1442 = vunpack.c.h.b16 %v1077
  %v1443 = vunpack.c.l.b16 %v1078
  %v1444 = vunpack.c.l.b16 %v1079
  %v1445 = vunpack.c.h.b16 %v1079
  %v1446 = vunpack.c.l.b16 %v1080
  %v1447 = vunpack.c.l.b16 %v1081
  %v1448 = vunpack.c.h.b16 %v1081
  %v1449 = vunpack.c.l.b16 %v1082
  %v1450 = vunpack.c.l.b16 %v1083
  %v1451 = vunpack.c.h.b16 %v1083
  %v1452 = vunpack.c.l.b16 %v1084
  %v1453 = vunpack.c.l.b16 %v1085
  %v1454 = vunpack.c.h.b16 %v1085
  %v1455 = vunpack.c.l.b16 %v1086
  %v1456 = vunpack.c.l.b16 %v1087
  %v1457 = vunpack.c.h.b16 %v1087
  %v1458 = vunpack.c.l.b16 %v1088
  %v1459 = vunpack.c.l.b16 %v1089
  %v1460 = vunpack.c.h.b16 %v1089
  %v1461 = vunpack.c.l.b16 %v1090
  %v1462 = vunpack.c.l.b16 %v1091
  %v1463 = vunpack.c.h.b16 %v1091
  %v1464 = vunpack.c.l.b16 %v1092
  %v1465 = vunpack.c.l.b16 %v1093
  %v1466 = vunpack.c.h.b16 %v1093
  %v1467 = vunpack.c.l.b16 %v1094
  %v1468 = vunpack.c.l.b16 %v1095
  %v1469 = vunpack.c.h.b16 %v1095
  %v1470 = vunpack.c.l.b16 %v1096
  %v1471 = vpack.c.b16 %v1282, %v1279
  %v1472 = vpack.c.b16 %v1283, %v1280
  %v1473 = vpack.c.b16 %v1284, %v1281
  %v1474 = vpack.c.b16 %v1288, %v1285
  %v1475 = vpack.c.b16 %v1289, %v1286
  %v1476 = vpack.c.b16 %v1290, %v1287
  %v1477 = vpack.c.b16 %v1294, %v1291
  %v1478 = vpack.c.b16 %v1295, %v1292
  %v1479 = vpack.c.b16 %v1296, %v1293
  %v1480 = vpack.c.b16 %v1300, %v1297
  %v1481 = vpack.c.b16 %v1301, %v1298
  %v1482 = vpack.c.b16 %v1302, %v1299
  %v1483 = vpack.c.b16 %v1306, %v1303
  %v1484 = vpack.c.b16 %v1307, %v1304
  %v1485 = vpack.c.b16 %v1308, %v1305
  %v1486 = vpack.c.b16 %v1312, %v1309
  %v1487 = vpack.c.b16 %v1313, %v1310
  %v1488 = vpack.c.b16 %v1314, %v1311
  %v1489 = vpack.c.b16 %v1318, %v1315
  %v1490 = vpack.c.b16 %v1319, %v1316
  %v1491 = vpack.c.b16 %v1320, %v1317
  %v1492 = vpack.c.b16 %v1324, %v1321
  %v1493 = vpack.c.b16 %v1325, %v1322
  %v1494 = vpack.c.b16 %v1326, %v1323
  %v1495 = vpack.c.b16 %v1330, %v1327
  %v1496 = vpack.c.b16 %v1331, %v1328
  %v1497 = vpack.c.b16 %v1332, %v1329
  %v1498 = vpack.c.b16 %v1336, %v1333
  %v1499 = vpack.c.b16 %v1337, %v1334
  %v1500 = vpack.c.b16 %v1338, %v1335
  %v1501 = vpack.c.b16 %v1342, %v1339
  %v1502 = vpack.c.b16 %v1343, %v1340
  %v1503 = vpack.c.b16 %v1344, %v1341
  %v1504 = vpack.c.b16 %v1348, %v1345
  %v1505 = vpack.c.b16 %v1349, %v1346
  %v1506 = vpack.c.b16 %v1350, %v1347
  %v1507 = vpack.c.b16 %v1354, %v1351
  %v1508 = vpack.c.b16 %v1355, %v1352
  %v1509 = vpack.c.b16 %v1356, %v1353
  %v1510 = vpack.c.b16 %v1360, %v1357
  %v1511 = vpack.c.b16 %v1361, %v1358
  %v1512 = vpack.c.b16 %v1362, %v1359
  %v1513 = vpack.c.b16 %v1366, %v1363
  %v1514 = vpack.c.b16 %v1367, %v1364
  %v1515 = vpack.c.b16 %v1368, %v1365
  %v1516 = vpack.c.b16 %v1372, %v1369
  %v1517 = vpack.c.b16 %v1373, %v1370
  %v1518 = vpack.c.b16 %v1374, %v1371
  %v1519 = vpack.c.b16 %v1378, %v1375
  %v1520 = vpack.c.b16 %v1379, %v1376
  %v1521 = vpack.c.b16 %v1380, %v1377
  %v1522 = vpack.c.b16 %v1384, %v1381
  %v1523 = vpack.c.b16 %v1385, %v1382
  %v1524 = vpack.c.b16 %v1386, %v1383
  %v1525 = vpack.c.b16 %v1390, %v1387
  %v1526 = vpack.c.b16 %v1391, %v1388
  %v1527 = vpack.c.b16 %v1392, %v1389
  %v1528 = vpack.c.b16 %v1396, %v1393
  %v1529 = vpack.c.b16 %v1397, %v1394
  %v1530 = vpack.c.b16 %v1398, %v1395
  %v1531 = vpack.c.b16 %v1402, %v1399
  %v1532 = vpack.c.b16 %v1403, %v1400
  %v1533 = vpack.c.b16 %v1404, %v1401
  %v1534 = vpack.c.b16 %v1408, %v1405
  %v1535 = vpack.c.b16 %v1409, %v1406
  %v1536 = vpack.c.b16 %v1410, %v1407
  %v1537 = vpack.c.b16 %v1414, %v1411
  %v1538 = vpack.c.b16 %v1415, %v1412
  %v1539 = vpack.c.b16 %v1416, %v1413
  %v1540 = vpack.c.b16 %v1420, %v1417
  %v1541 = vpack.c.b16 %v1421, %v1418
  %v1542 = vpack.c.b16 %v1422, %v1419
  %v1543 = vpack.c.b16 %v1426, %v1423
  %v1544 = vpack.c.b16 %v1427, %v1424
  %v1545 = vpack.c.b16 %v1428, %v1425
  %v1546 = vpack.c.b16 %v1432, %v1429
  %v1547 = vpack.c.b16 %v1433, %v1430
  %v1548 = vpack.c.b16 %v1434, %v1431
  %v1549 = vpack.c.b16 %v1438, %v1435
  %v1550 = vpack.c.b16 %v1439, %v1436
  %v1551 = vpack.c.b16 %v1440, %v1437
  %v1552 = vpack.c.b16 %v1444, %v1441
  %v1553 = vpack.c.b16 %v1445, %v1442
  %v1554 = vpack.c.b16 %v1446, %v1443
  %v1555 = vpack.c.b16 %v1450, %v1447
  %v1556 = vpack.c.b16 %v1451, %v1448
  %v1557 = vpack.c.b16 %v1452, %v1449
  %v1558 = vpack.c.b16 %v1456, %v1453
  %v1559 = vpack.c.b16 %v1457, %v1454
  %v1560 = vpack.c.b16 %v1458, %v1455
  %v1561 = vpack.c.b16 %v1462, %v1459
  %v1562 = vpack.c.b16 %v1463, %v1460
  %v1563 = vpack.c.b16 %v1464, %v1461
  %v1564 = vpack.c.b16 %v1468, %v1465
  %v1565 = vpack.c.b16 %v1469, %v1466
  %v1566 = vpack.c.b16 %v1470, %v1467
  %1663 = vmatprep.subr.bf16.mxu0 %v1493
  %1664 = vmatpush1.bf16.msra.mxu0 %v1492
  %1665 = vmatprep.subr.bf16.mxu0 %v1490
  %1666 = vmatpush1.bf16.msra.mxu0 %v1489
  %1667 = vmatprep.subr.bf16.mxu0 %v1487
  %1668 = vmatpush1.bf16.msra.mxu0 %v1486
  %1669 = vmatprep.subr.bf16.mxu0 %v1484
  %1670 = vmatpush1.bf16.msra.mxu0 %v1483
  %1671 = vmatprep.subr.bf16.mxu0 %v1481
  %1672 = vmatpush1.bf16.msra.mxu0 %v1480
  %1673 = vmatprep.subr.bf16.mxu0 %v1478
  %1674 = vmatpush1.bf16.msra.mxu0 %v1477
  %1675 = vmatprep.subr.bf16.mxu0 %v1475
  %1676 = vmatpush1.bf16.msra.mxu0 %v1474
  %1677 = vmatprep.subr.bf16.mxu0 %v1472
  %1678 = vmatpush1.bf16.msra.mxu0 %v1471
  %1679 = vmatprep.subr.bf16.mxu0 %v1517
  %1680 = vmatpush2.bf16.msra.mxu0 %v1516
  %1681 = vmatprep.subr.bf16.mxu0 %v1514
  %1682 = vmatpush2.bf16.msra.mxu0 %v1513
  %1683 = vmatprep.subr.bf16.mxu0 %v1511
  %1684 = vmatpush2.bf16.msra.mxu0 %v1510
  %1685 = vmatprep.subr.bf16.mxu0 %v1508
  %1686 = vmatpush2.bf16.msra.mxu0 %v1507
  %1687 = vmatprep.subr.bf16.mxu0 %v1505
  %1688 = vmatpush2.bf16.msra.mxu0 %v1504
  %1689 = vmatprep.subr.bf16.mxu0 %v1502
  %1690 = vmatpush2.bf16.msra.mxu0 %v1501
  %1691 = vmatprep.subr.bf16.mxu0 %v1499
  %1692 = vmatpush2.bf16.msra.mxu0 %v1498
  %1693 = vmatprep.subr.bf16.mxu0 %v1496
  %1694 = vmatpush2.bf16.msra.mxu0 %v1495
  %1695 = vmatprep.mubr.bf16.mxu0 %v1128
  %1696 = vmatmul.mubr.bf16.gmra.mxu0 %v1127
  %v1697 = vpop.f32.mrf.mxu0
  %v1698 = vadd.f32 0.0, %v1697
  %v1699 = vpop.f32.mrf.mxu0
  %v1700 = vadd.f32 0.0, %v1699
  %v1701 = vpop.f32.mrf.mxu0
  %v1702 = vadd.f32 0.0, %v1701
  %v1703 = vpop.f32.mrf.mxu0
  %v1704 = vadd.f32 0.0, %v1703
  %1705 = vmatprep.mubr.bf16.mxu0 %v1132
  %1706 = vmatmul.mubr.bf16.gmra.mxu0 %v1131
  %v1707 = vpop.f32.mrf.mxu0
  %v1708 = vadd.f32 0.0, %v1707
  %v1709 = vpop.f32.mrf.mxu0
  %v1710 = vadd.f32 0.0, %v1709
  %v1711 = vpop.f32.mrf.mxu0
  %v1712 = vadd.f32 0.0, %v1711
  %v1713 = vpop.f32.mrf.mxu0
  %v1714 = vadd.f32 0.0, %v1713
  %1715 = vmatprep.mubr.bf16.mxu0 %v1136
  %1716 = vmatmul.mubr.bf16.gmra.mxu0 %v1135
  %v1717 = vpop.f32.mrf.mxu0
  %v1718 = vadd.f32 0.0, %v1717
  %v1719 = vpop.f32.mrf.mxu0
  %v1720 = vadd.f32 0.0, %v1719
  %v1721 = vpop.f32.mrf.mxu0
  %v1722 = vpop.f32.mrf.mxu0
  %1723 = vdwg.mxu0
  %1724 = vmatprep.subr.bf16.mxu0 %v1541
  %1725 = vmatpush1.bf16.msra.mxu0 %v1540
  %1726 = vmatprep.subr.bf16.mxu0 %v1538
  %1727 = vmatpush1.bf16.msra.mxu0 %v1537
  %1728 = vmatprep.subr.bf16.mxu0 %v1535
  %1729 = vmatpush1.bf16.msra.mxu0 %v1534
  %1730 = vmatprep.subr.bf16.mxu0 %v1532
  %1731 = vmatpush1.bf16.msra.mxu0 %v1531
  %1732 = vmatprep.subr.bf16.mxu0 %v1529
  %1733 = vmatpush1.bf16.msra.mxu0 %v1528
  %1734 = vmatprep.subr.bf16.mxu0 %v1526
  %1735 = vmatpush1.bf16.msra.mxu0 %v1525
  %1736 = vmatprep.subr.bf16.mxu0 %v1523
  %1737 = vmatpush1.bf16.msra.mxu0 %v1522
  %1738 = vmatprep.subr.bf16.mxu0 %v1520
  %1739 = vmatpush1.bf16.msra.mxu0 %v1519
  %1740 = vmatprep.subr.bf16.mxu0 %v1565
  %1741 = vmatpush2.bf16.msra.mxu0 %v1564
  %1742 = vmatprep.subr.bf16.mxu0 %v1562
  %1743 = vmatpush2.bf16.msra.mxu0 %v1561
  %1744 = vmatprep.subr.bf16.mxu0 %v1559
  %1745 = vmatpush2.bf16.msra.mxu0 %v1558
  %1746 = vmatprep.subr.bf16.mxu0 %v1556
  %1747 = vmatpush2.bf16.msra.mxu0 %v1555
  %1748 = vmatprep.subr.bf16.mxu0 %v1553
  %1749 = vmatpush2.bf16.msra.mxu0 %v1552
  %1750 = vmatprep.subr.bf16.mxu0 %v1550
  %1751 = vmatpush2.bf16.msra.mxu0 %v1549
  %1752 = vmatprep.subr.bf16.mxu0 %v1547
  %1753 = vmatpush2.bf16.msra.mxu0 %v1546
  %1754 = vmatprep.subr.bf16.mxu0 %v1544
  %1755 = vmatpush2.bf16.msra.mxu0 %v1543
  %1756 = vmatprep.mubr.bf16.mxu0 %v1130
  %1757 = vmatmul.mubr.bf16.gmra.mxu0 %v1129
  %v1758 = vpop.f32.mrf.mxu0
  %v1759 = vadd.f32 %v1698, %v1758
  %v1760 = vpop.f32.mrf.mxu0
  %v1761 = vadd.f32 %v1700, %v1760
  %v1762 = vpop.f32.mrf.mxu0
  %v1763 = vadd.f32 %v1702, %v1762
  %v1764 = vpop.f32.mrf.mxu0
  %v1765 = vadd.f32 %v1704, %v1764
  %1766 = vmatprep.mubr.bf16.mxu0 %v1134
  %1767 = vmatmul.mubr.bf16.gmra.mxu0 %v1133
  %v1768 = vpop.f32.mrf.mxu0
  %v1769 = vadd.f32 %v1708, %v1768
  %v1770 = vpop.f32.mrf.mxu0
  %v1771 = vadd.f32 %v1710, %v1770
  %v1772 = vpop.f32.mrf.mxu0
  %v1773 = vadd.f32 %v1712, %v1772
  %v1774 = vpop.f32.mrf.mxu0
  %v1775 = vadd.f32 %v1714, %v1774
  %1776 = vmatprep.mubr.bf16.mxu0 %v1138
  %1777 = vmatmul.mubr.bf16.gmra.mxu0 %v1137
  %v1778 = vpop.f32.mrf.mxu0
  %v1779 = vadd.f32 %v1718, %v1778
  %v1780 = vpop.f32.mrf.mxu0
  %v1781 = vadd.f32 %v1720, %v1780
  %v1782 = vpop.f32.mrf.mxu0
  %v1783 = vpop.f32.mrf.mxu0
  %1784 = vdwg.mxu0
  %1785 = vmatprep.subr.bf16.mxu0 0
  %1786 = vmatpush1.bf16.msra.mxu0 %v1494
  %1787 = vmatprep.subr.bf16.mxu0 0
  %1788 = vmatpush1.bf16.msra.mxu0 %v1491
  %1789 = vmatprep.subr.bf16.mxu0 0
  %1790 = vmatpush1.bf16.msra.mxu0 %v1488
  %1791 = vmatprep.subr.bf16.mxu0 0
  %1792 = vmatpush1.bf16.msra.mxu0 %v1485
  %1793 = vmatprep.subr.bf16.mxu0 0
  %1794 = vmatpush1.bf16.msra.mxu0 %v1482
  %1795 = vmatprep.subr.bf16.mxu0 0
  %1796 = vmatpush1.bf16.msra.mxu0 %v1479
  %1797 = vmatprep.subr.bf16.mxu0 0
  %1798 = vmatpush1.bf16.msra.mxu0 %v1476
  %1799 = vmatprep.subr.bf16.mxu0 0
  %1800 = vmatpush1.bf16.msra.mxu0 %v1473
  %1801 = vmatprep.subr.bf16.mxu0 0
  %1802 = vmatpush2.bf16.msra.mxu0 %v1518
  %1803 = vmatprep.subr.bf16.mxu0 0
  %1804 = vmatpush2.bf16.msra.mxu0 %v1515
  %1805 = vmatprep.subr.bf16.mxu0 0
  %1806 = vmatpush2.bf16.msra.mxu0 %v1512
  %1807 = vmatprep.subr.bf16.mxu0 0
  %1808 = vmatpush2.bf16.msra.mxu0 %v1509
  %1809 = vmatprep.subr.bf16.mxu0 0
  %1810 = vmatpush2.bf16.msra.mxu0 %v1506
  %1811 = vmatprep.subr.bf16.mxu0 0
  %1812 = vmatpush2.bf16.msra.mxu0 %v1503
  %1813 = vmatprep.subr.bf16.mxu0 0
  %1814 = vmatpush2.bf16.msra.mxu0 %v1500
  %1815 = vmatprep.subr.bf16.mxu0 0
  %1816 = vmatpush2.bf16.msra.mxu0 %v1497
  %1817 = vmatprep.mubr.bf16.mxu0 %v1128
  %1818 = vmatmul.mubr.bf16.gmra.mxu0 %v1127
  %v1819 = vpop.f32.mrf.mxu0
  %v1820 = vadd.f32 0.0, %v1819
  %v1821 = vpop.f32.mrf.mxu0
  %v1822 = vpop.f32.mrf.mxu0
  %v1823 = vadd.f32 0.0, %v1822
  %v1824 = vpop.f32.mrf.mxu0
  %1825 = vmatprep.mubr.bf16.mxu0 %v1132
  %1826 = vmatmul.mubr.bf16.gmra.mxu0 %v1131
  %v1827 = vpop.f32.mrf.mxu0
  %v1828 = vadd.f32 0.0, %v1827
  %v1829 = vpop.f32.mrf.mxu0
  %v1830 = vpop.f32.mrf.mxu0
  %v1831 = vadd.f32 0.0, %v1830
  %v1832 = vpop.f32.mrf.mxu0
  %1833 = vmatprep.mubr.bf16.mxu0 %v1136
  %1834 = vmatmul.mubr.bf16.gmra.mxu0 %v1135
  %v1835 = vpop.f32.mrf.mxu0
  %v1836 = vadd.f32 0.0, %v1835
  %v1837 = vpop.f32.mrf.mxu0
  %v1838 = vpop.f32.mrf.mxu0
  %v1839 = vpop.f32.mrf.mxu0
  %1840 = vdwg.mxu0
  %1841 = vmatprep.subr.bf16.mxu0 0
  %1842 = vmatpush1.bf16.msra.mxu0 %v1542
  %1843 = vmatprep.subr.bf16.mxu0 0
  %1844 = vmatpush1.bf16.msra.mxu0 %v1539
  %1845 = vmatprep.subr.bf16.mxu0 0
  %1846 = vmatpush1.bf16.msra.mxu0 %v1536
  %1847 = vmatprep.subr.bf16.mxu0 0
  %1848 = vmatpush1.bf16.msra.mxu0 %v1533
  %1849 = vmatprep.subr.bf16.mxu0 0
  %1850 = vmatpush1.bf16.msra.mxu0 %v1530
  %1851 = vmatprep.subr.bf16.mxu0 0
  %1852 = vmatpush1.bf16.msra.mxu0 %v1527
  %1853 = vmatprep.subr.bf16.mxu0 0
  %1854 = vmatpush1.bf16.msra.mxu0 %v1524
  %1855 = vmatprep.subr.bf16.mxu0 0
  %1856 = vmatpush1.bf16.msra.mxu0 %v1521
  %1857 = vmatprep.subr.bf16.mxu0 0
  %1858 = vmatpush2.bf16.msra.mxu0 %v1566
  %1859 = vmatprep.subr.bf16.mxu0 0
  %1860 = vmatpush2.bf16.msra.mxu0 %v1563
  %1861 = vmatprep.subr.bf16.mxu0 0
  %1862 = vmatpush2.bf16.msra.mxu0 %v1560
  %1863 = vmatprep.subr.bf16.mxu0 0
  %1864 = vmatpush2.bf16.msra.mxu0 %v1557
  %1865 = vmatprep.subr.bf16.mxu0 0
  %1866 = vmatpush2.bf16.msra.mxu0 %v1554
  %1867 = vmatprep.subr.bf16.mxu0 0
  %1868 = vmatpush2.bf16.msra.mxu0 %v1551
  %1869 = vmatprep.subr.bf16.mxu0 0
  %1870 = vmatpush2.bf16.msra.mxu0 %v1548
  %1871 = vmatprep.subr.bf16.mxu0 0
  %1872 = vmatpush2.bf16.msra.mxu0 %v1545
  %1873 = vmatprep.mubr.bf16.mxu0 %v1130
  %1874 = vmatmul.mubr.bf16.gmra.mxu0 %v1129
  %v1875 = vpop.f32.mrf.mxu0
  %v1876 = vadd.f32 %v1820, %v1875
  %v1877 = vpop.f32.mrf.mxu0
  %v1878 = vpop.f32.mrf.mxu0
  %v1879 = vadd.f32 %v1823, %v1878
  %v1880 = vpop.f32.mrf.mxu0
  %1881 = vmatprep.mubr.bf16.mxu0 %v1134
  %1882 = vmatmul.mubr.bf16.gmra.mxu0 %v1133
  %v1883 = vpop.f32.mrf.mxu0
  %v1884 = vadd.f32 %v1828, %v1883
  %v1885 = vpop.f32.mrf.mxu0
  %v1886 = vpop.f32.mrf.mxu0
  %v1887 = vadd.f32 %v1831, %v1886
  %v1888 = vpop.f32.mrf.mxu0
  %1889 = vmatprep.mubr.bf16.mxu0 %v1138
  %1890 = vmatmul.mubr.bf16.gmra.mxu0 %v1137
  %v1891 = vpop.f32.mrf.mxu0
  %v1892 = vadd.f32 %v1836, %v1891
  %v1893 = vpop.f32.mrf.mxu0
  %v1894 = vpop.f32.mrf.mxu0
  %v1895 = vpop.f32.mrf.mxu0
  %1896 = vdwg.mxu0
  %v1897 = vmul.f32 %v831, %v831
  %v1898 = vmul.f32 %v833, %v833
  %v1899 = vmul.f32 %v948, %v948
  %v1900 = vmul.f32 %v835, %v835
  %v1901 = vmul.f32 %v837, %v837
  %v1902 = vmul.f32 %v951, %v951
  %v1903 = vmul.f32 %v841, %v841
  %v1904 = vmul.f32 %v843, %v843
  %v1905 = vmul.f32 %v956, %v956
  %v1906 = vmul.f32 %v845, %v845
  %v1907 = vmul.f32 %v847, %v847
  %v1908 = vmul.f32 %v959, %v959
  %v1909 = vmul.f32 %v851, %v851
  %v1910 = vmul.f32 %v853, %v853
  %v1911 = vmul.f32 %v964, %v964
  %v1912 = vmul.f32 %v1759, %v1759
  %v1913 = vmul.f32 %v1761, %v1761
  %v1914 = vmul.f32 %v1876, %v1876
  %v1915 = vmul.f32 %v1763, %v1763
  %v1916 = vmul.f32 %v1765, %v1765
  %v1917 = vmul.f32 %v1879, %v1879
  %v1918 = vmul.f32 %v1769, %v1769
  %v1919 = vmul.f32 %v1771, %v1771
  %v1920 = vmul.f32 %v1884, %v1884
  %v1921 = vmul.f32 %v1773, %v1773
  %v1922 = vmul.f32 %v1775, %v1775
  %v1923 = vmul.f32 %v1887, %v1887
  %v1924 = vmul.f32 %v1779, %v1779
  %v1925 = vmul.f32 %v1781, %v1781
  %v1926 = vmul.f32 %v1892, %v1892
  %v1927 = vadd.f32 %v1897, %v1912
  %v1928 = vadd.f32 %v1898, %v1913
  %v1929 = vadd.f32 %v1899, %v1914
  %v1930 = vadd.f32 %v1900, %v1915
  %v1931 = vadd.f32 %v1901, %v1916
  %v1932 = vadd.f32 %v1902, %v1917
  %v1933 = vadd.f32 %v1903, %v1918
  %v1934 = vadd.f32 %v1904, %v1919
  %v1935 = vadd.f32 %v1905, %v1920
  %v1936 = vadd.f32 %v1906, %v1921
  %v1937 = vadd.f32 %v1907, %v1922
  %v1938 = vadd.f32 %v1908, %v1923
  %v1939 = vadd.f32 %v1909, %v1924
  %v1940 = vadd.f32 %v1910, %v1925
  %v1941 = vadd.f32 %v1911, %v1926
  %v1942 = vpack.c.bf16 %v1930, %v1927
  %v1943 = vpack.c.bf16 %v1931, %v1928
  %v1944 = vpack.c.bf16 %v1932, %v1929
  %v1945 = vpack.c.bf16 %v1936, %v1933
  %v1946 = vpack.c.bf16 %v1937, %v1934
  %v1947 = vpack.c.bf16 %v1938, %v1935
  %v1948 = vpack.c.bf16 %v1939, %v1939
  %v1949 = vpack.c.bf16 %v1940, %v1940
  %v1950 = vpack.c.bf16 %v1941, %v1941
  %v1951 = vld [vmem:[%s3] sm:$0xf]
  %v1952 = vld [vmem:[%s3 + $0x4] sm:$0xf]
  %v1953 = vld [vmem:[%s3 + $0x8] sm:$0xf]
  %v1954 = vld [vmem:[%s3 + $0xc] sm:$0xf]
  %v1955 = vld [vmem:[%s3 + $0x10] sm:$0xf]
  %v1956 = vld [vmem:[%s3 + $0x14] sm:$0xf]
  %v1957 = vld [vmem:[%s3 + $0x18] sm:$0xf]
  %v1958 = vld [vmem:[%s3 + $0x1c] sm:$0xf]
  %v1959 = vld [vmem:[%s3 + $0x20] sm:$0xf]
  %v1960 = vld [vmem:[%s3 + $0x24] sm:$0xf]
  %v1961 = vld [vmem:[%s3 + $0x28] sm:$0xf]
  %v1962 = vld [vmem:[%s3 + $0x2c] sm:$0xf]
  %v1963 = vld [vmem:[%s3 + $0x30] sm:$0xf]
  %v1964 = vld [vmem:[%s3 + $0x34] sm:$0xf]
  %v1965 = vld [vmem:[%s3 + $0x38] sm:$0xf]
  %v1966 = vld [vmem:[%s3 + $0x3c] sm:$0xf]
  %v1967 = vld [vmem:[%s3 + $0x40] sm:$0xf]
  %v1968 = vld [vmem:[%s3 + $0x44] sm:$0xf]
  %v1969 = vld [vmem:[%s3 + $0x48] sm:$0xf]
  %v1970 = vld [vmem:[%s3 + $0x4c] sm:$0xf]
  %v1971 = vld [vmem:[%s3 + $0x50] sm:$0xf]
  %v1972 = vld [vmem:[%s3 + $0x54] sm:$0xf]
  %v1973 = vld [vmem:[%s3 + $0x58] sm:$0xf]
  %v1974 = vld [vmem:[%s3 + $0x5c] sm:$0xf]
  %v1975 = vld [vmem:[%s3 + $0x60] sm:$0xf]
  %v1976 = vld [vmem:[%s3 + $0x64] sm:$0xf]
  %v1977 = vld [vmem:[%s3 + $0x68] sm:$0xf]
  %v1978 = vld [vmem:[%s3 + $0x6c] sm:$0xf]
  %v1979 = vld [vmem:[%s3 + $0x70] sm:$0xf]
  %v1980 = vld [vmem:[%s3 + $0x74] sm:$0xf]
  %v1981 = vld [vmem:[%s3 + $0x78] sm:$0xf]
  %v1982 = vld [vmem:[%s3 + $0x7c] sm:$0xf]
  %v1983 = vld [vmem:[%s3 + $0x80] sm:$0xf]
  %v1984 = vld [vmem:[%s3 + $0x84] sm:$0xf]
  %v1985 = vld [vmem:[%s3 + $0x88] sm:$0xf]
  %v1986 = vld [vmem:[%s3 + $0x8c] sm:$0xf]
  %v1987 = vld [vmem:[%s3 + $0x90] sm:$0xf]
  %v1988 = vld [vmem:[%s3 + $0x94] sm:$0xf]
  %v1989 = vld [vmem:[%s3 + $0x98] sm:$0xf]
  %v1990 = vld [vmem:[%s3 + $0x9c] sm:$0xf]
  %v1991 = vld [vmem:[%s3 + $0xa0] sm:$0xf]
  %v1992 = vld [vmem:[%s3 + $0xa4] sm:$0xf]
  %v1993 = vld [vmem:[%s3 + $0xa8] sm:$0xf]
  %v1994 = vld [vmem:[%s3 + $0xac] sm:$0xf]
  %v1995 = vld [vmem:[%s3 + $0xb0] sm:$0xf]
  %v1996 = vld [vmem:[%s3 + $0xb4] sm:$0xf]
  %v1997 = vld [vmem:[%s3 + $0xb8] sm:$0xf]
  %v1998 = vld [vmem:[%s3 + $0xbc] sm:$0xf]
  %v2047 = vunpack.c.l.b16 %v1951
  %v2048 = vunpack.c.l.b16 %v1952
  %v2049 = vunpack.c.l.b16 %v1953
  %v2050 = vunpack.c.l.b16 %v1954
  %v2051 = vunpack.c.l.b16 %v1955
  %v2052 = vunpack.c.l.b16 %v1956
  %v2053 = vunpack.c.l.b16 %v1957
  %v2054 = vunpack.c.l.b16 %v1958
  %v2055 = vunpack.c.l.b16 %v1959
  %v2056 = vunpack.c.l.b16 %v1960
  %v2057 = vunpack.c.l.b16 %v1961
  %v2058 = vunpack.c.l.b16 %v1962
  %v2059 = vunpack.c.l.b16 %v1963
  %v2060 = vunpack.c.l.b16 %v1964
  %v2061 = vunpack.c.l.b16 %v1965
  %v2062 = vunpack.c.l.b16 %v1966
  %v2063 = vunpack.c.l.b16 %v1967
  %v2064 = vunpack.c.l.b16 %v1968
  %v2065 = vunpack.c.l.b16 %v1969
  %v2066 = vunpack.c.l.b16 %v1970
  %v2067 = vunpack.c.l.b16 %v1971
  %v2068 = vunpack.c.l.b16 %v1972
  %v2069 = vunpack.c.l.b16 %v1973
  %v2070 = vunpack.c.l.b16 %v1974
  %v2071 = vunpack.c.l.b16 %v1975
  %v2072 = vunpack.c.l.b16 %v1976
  %v2073 = vunpack.c.l.b16 %v1977
  %v2074 = vunpack.c.l.b16 %v1978
  %v2075 = vunpack.c.l.b16 %v1979
  %v2076 = vunpack.c.l.b16 %v1980
  %v2077 = vunpack.c.l.b16 %v1981
  %v2078 = vunpack.c.l.b16 %v1982
  %v2079 = vunpack.c.l.b16 %v1983
  %v2080 = vunpack.c.l.b16 %v1984
  %v2081 = vunpack.c.l.b16 %v1985
  %v2082 = vunpack.c.l.b16 %v1986
  %v2083 = vunpack.c.l.b16 %v1987
  %v2084 = vunpack.c.l.b16 %v1988
  %v2085 = vunpack.c.l.b16 %v1989
  %v2086 = vunpack.c.l.b16 %v1990
  %v2087 = vunpack.c.l.b16 %v1991
  %v2088 = vunpack.c.l.b16 %v1992
  %v2089 = vunpack.c.l.b16 %v1993
  %v2090 = vunpack.c.l.b16 %v1994
  %v2091 = vunpack.c.l.b16 %v1995
  %v2092 = vunpack.c.l.b16 %v1996
  %v2093 = vunpack.c.l.b16 %v1997
  %v2094 = vunpack.c.l.b16 %v1998
  %v2095 = vpack.c.b16 %v2048, %v2047
  %v2096 = vpack.c.b16 %v2050, %v2049
  %v2097 = vpack.c.b16 %v2052, %v2051
  %v2098 = vpack.c.b16 %v2054, %v2053
  %v2099 = vpack.c.b16 %v2056, %v2055
  %v2100 = vpack.c.b16 %v2058, %v2057
  %v2101 = vpack.c.b16 %v2060, %v2059
  %v2102 = vpack.c.b16 %v2062, %v2061
  %v2103 = vpack.c.b16 %v2064, %v2063
  %v2104 = vpack.c.b16 %v2066, %v2065
  %v2105 = vpack.c.b16 %v2068, %v2067
  %v2106 = vpack.c.b16 %v2070, %v2069
  %v2107 = vpack.c.b16 %v2072, %v2071
  %v2108 = vpack.c.b16 %v2074, %v2073
  %v2109 = vpack.c.b16 %v2076, %v2075
  %v2110 = vpack.c.b16 %v2078, %v2077
  %v2111 = vpack.c.b16 %v2080, %v2079
  %v2112 = vpack.c.b16 %v2082, %v2081
  %v2113 = vpack.c.b16 %v2084, %v2083
  %v2114 = vpack.c.b16 %v2086, %v2085
  %v2115 = vpack.c.b16 %v2088, %v2087
  %v2116 = vpack.c.b16 %v2090, %v2089
  %v2117 = vpack.c.b16 %v2092, %v2091
  %v2118 = vpack.c.b16 %v2094, %v2093
  %2143 = vmatprep.subr.bf16.mxu0 0
  %2144 = vmatpush1.bf16.msra.mxu0 %v2102
  %2145 = vmatprep.subr.bf16.mxu0 0
  %2146 = vmatpush1.bf16.msra.mxu0 %v2101
  %2147 = vmatprep.subr.bf16.mxu0 0
  %2148 = vmatpush1.bf16.msra.mxu0 %v2100
  %2149 = vmatprep.subr.bf16.mxu0 0
  %2150 = vmatpush1.bf16.msra.mxu0 %v2099
  %2151 = vmatprep.subr.bf16.mxu0 0
  %2152 = vmatpush1.bf16.msra.mxu0 %v2098
  %2153 = vmatprep.subr.bf16.mxu0 0
  %2154 = vmatpush1.bf16.msra.mxu0 %v2097
  %2155 = vmatprep.subr.bf16.mxu0 0
  %2156 = vmatpush1.bf16.msra.mxu0 %v2096
  %2157 = vmatprep.subr.bf16.mxu0 0
  %2158 = vmatpush1.bf16.msra.mxu0 %v2095
  %2159 = vmatprep.subr.bf16.mxu0 0
  %2160 = vmatpush2.bf16.msra.mxu0 %v2110
  %2161 = vmatprep.subr.bf16.mxu0 0
  %2162 = vmatpush2.bf16.msra.mxu0 %v2109
  %2163 = vmatprep.subr.bf16.mxu0 0
  %2164 = vmatpush2.bf16.msra.mxu0 %v2108
  %2165 = vmatprep.subr.bf16.mxu0 0
  %2166 = vmatpush2.bf16.msra.mxu0 %v2107
  %2167 = vmatprep.subr.bf16.mxu0 0
  %2168 = vmatpush2.bf16.msra.mxu0 %v2106
  %2169 = vmatprep.subr.bf16.mxu0 0
  %2170 = vmatpush2.bf16.msra.mxu0 %v2105
  %2171 = vmatprep.subr.bf16.mxu0 0
  %2172 = vmatpush2.bf16.msra.mxu0 %v2104
  %2173 = vmatprep.subr.bf16.mxu0 0
  %2174 = vmatpush2.bf16.msra.mxu0 %v2103
  %2175 = vmatprep.mubr.bf16.mxu0 %v1943
  %2176 = vmatmul.mubr.bf16.gmra.mxu0 %v1942
  %v2177 = vpop.f32.mrf.mxu0
  %v2178 = vadd.f32 0.0, %v2177
  %v2179 = vpop.f32.mrf.mxu0
  %v2180 = vpop.f32.mrf.mxu0
  %v2181 = vadd.f32 0.0, %v2180
  %v2182 = vpop.f32.mrf.mxu0
  %2183 = vmatprep.mubr.bf16.mxu0 %v1946
  %2184 = vmatmul.mubr.bf16.gmra.mxu0 %v1945
  %v2185 = vpop.f32.mrf.mxu0
  %v2186 = vadd.f32 0.0, %v2185
  %v2187 = vpop.f32.mrf.mxu0
  %v2188 = vpop.f32.mrf.mxu0
  %v2189 = vadd.f32 0.0, %v2188
  %v2190 = vpop.f32.mrf.mxu0
  %2191 = vmatprep.mubr.bf16.mxu0 %v1949
  %2192 = vmatmul.mubr.bf16.gmra.mxu0 %v1948
  %v2193 = vpop.f32.mrf.mxu0
  %v2194 = vadd.f32 0.0, %v2193
  %v2195 = vpop.f32.mrf.mxu0
  %v2196 = vpop.f32.mrf.mxu0
  %v2197 = vpop.f32.mrf.mxu0
  %2198 = vdwg.mxu0
  %2199 = vmatprep.subr.bf16.mxu0 0
  %2200 = vmatpush1.bf16.msra.mxu0 %v2118
  %2201 = vmatprep.subr.bf16.mxu0 0
  %2202 = vmatpush1.bf16.msra.mxu0 %v2117
  %2203 = vmatprep.subr.bf16.mxu0 0
  %2204 = vmatpush1.bf16.msra.mxu0 %v2116
  %2205 = vmatprep.subr.bf16.mxu0 0
  %2206 = vmatpush1.bf16.msra.mxu0 %v2115
  %2207 = vmatprep.subr.bf16.mxu0 0
  %2208 = vmatpush1.bf16.msra.mxu0 %v2114
  %2209 = vmatprep.subr.bf16.mxu0 0
  %2210 = vmatpush1.bf16.msra.mxu0 %v2113
  %2211 = vmatprep.subr.bf16.mxu0 0
  %2212 = vmatpush1.bf16.msra.mxu0 %v2112
  %2213 = vmatprep.subr.bf16.mxu0 0
  %2214 = vmatpush1.bf16.msra.mxu0 %v2111
  %2215 = vmatprep.subr.bf16.mxu0 0
  %2216 = vmatpush2.bf16.msra.mxu0 0
  %2217 = vmatprep.subr.bf16.mxu0 0
  %2218 = vmatpush2.bf16.msra.mxu0 0
  %2219 = vmatprep.subr.bf16.mxu0 0
  %2220 = vmatpush2.bf16.msra.mxu0 0
  %2221 = vmatprep.subr.bf16.mxu0 0
  %2222 = vmatpush2.bf16.msra.mxu0 0
  %2223 = vmatprep.subr.bf16.mxu0 0
  %2224 = vmatpush2.bf16.msra.mxu0 0
  %2225 = vmatprep.subr.bf16.mxu0 0
  %2226 = vmatpush2.bf16.msra.mxu0 0
  %2227 = vmatprep.subr.bf16.mxu0 0
  %2228 = vmatpush2.bf16.msra.mxu0 0
  %2229 = vmatprep.subr.bf16.mxu0 0
  %2230 = vmatpush2.bf16.msra.mxu0 0
  %2231 = vmatprep.mubr.bf16.mxu0 0
  %2232 = vmatmul.mubr.bf16.gmra.mxu0 %v1944
  %v2233 = vpop.f32.mrf.mxu0
  %v2234 = vadd.f32 %v2178, %v2233
  %v2235 = vpop.f32.mrf.mxu0
  %v2236 = vpop.f32.mrf.mxu0
  %v2237 = vadd.f32 %v2181, %v2236
  %v2238 = vpop.f32.mrf.mxu0
  %2239 = vmatprep.mubr.bf16.mxu0 0
  %2240 = vmatmul.mubr.bf16.gmra.mxu0 %v1947
  %v2241 = vpop.f32.mrf.mxu0
  %v2242 = vadd.f32 %v2186, %v2241
  %v2243 = vpop.f32.mrf.mxu0
  %v2244 = vpop.f32.mrf.mxu0
  %v2245 = vadd.f32 %v2189, %v2244
  %v2246 = vpop.f32.mrf.mxu0
  %2247 = vmatprep.mubr.bf16.mxu0 0
  %2248 = vmatmul.mubr.bf16.gmra.mxu0 %v1950
  %v2249 = vpop.f32.mrf.mxu0
  %v2250 = vadd.f32 %v2194, %v2249
  %v2251 = vpop.f32.mrf.mxu0
  %v2252 = vpop.f32.mrf.mxu0
  %v2253 = vpop.f32.mrf.mxu0
  %2254 = vdwg.mxu0
  %v2255 = vmax.f32 %v2234, 1e-05
  %v2256 = vmax.f32 %v2237, 1e-05
  %v2257 = vmax.f32 %v2242, 1e-05
  %v2258 = vmax.f32 %v2245, 1e-05
  %v2259 = vmax.f32 %v2250, 1e-05
  %v2260 = vlog2.pop %v2255
  %v2261 = vmul.f32 %v2260, 0.6931472
  %v2262 = vlog2.pop %v2256
  %v2263 = vmul.f32 %v2262, 0.6931472
  %v2264 = vlog2.pop %v2257
  %v2265 = vmul.f32 %v2264, 0.6931472
  %v2266 = vlog2.pop %v2258
  %v2267 = vmul.f32 %v2266, 0.6931472
  %v2268 = vlog2.pop %v2259
  %v2269 = vmul.f32 %v2268, 0.6931472
  %v2270 = vld [vmem:[%s4] sm:$0x1]
  %v2272 = vlaneseq
  %v2273 = vshrl.u32 %v2272, 7
  %v2274 = vsub.s32 0, %v2273
  %v2275 = vrot.slane %v2270, %v2274
  %v2277 = vmul.f32 %v2261, %v2275
  %v2278 = vmul.f32 %v2263, %v2275
  %v2279 = vmul.f32 %v2265, %v2275
  %v2280 = vmul.f32 %v2267, %v2275
  %v2281 = vmul.f32 %v2269, %v2275
  %2282 = vst [vmem:[%s5] sm:$0xff] %v2277
  %2283 = vst [vmem:[%s5 + $0x8] sm:$0xff] %v2278
  %2284 = vst [vmem:[%s5 + $0x10] sm:$0xff] %v2279
  %2285 = vst [vmem:[%s5 + $0x18] sm:$0xff] %v2280
  %2286 = vst [vmem:[%s5 + $0x20] sm:$0xff] %v2281
  // Predicated region
  $region22: #{_lambda_.1} parent=0 // pred_check
    _
  $region23: #{_lambda_.1} parent=0 // pred_check_branch
    %2288 = sbr.rel (0) target = $region25
  $region24: #{_lambda_.1} parent=0 // pred_region
    _
  $region25: #{_lambda_.1} parent=0 // pred_fallthru
    _
  // Predicated region
  $region26: #{_lambda_.1} parent=0 // pred_check
    _
  $region27: #{_lambda_.1} parent=0 // pred_check_branch
    %2290 = sbr.rel (0) target = $region29
  $region28: #{_lambda_.1} parent=0 // pred_region
    _
  $region29: #{_lambda_.1} parent=0 // pred_fallthru
    _

</llo_original>
